<compile_context>
chip_gen: v5e
topology: v5e:2x2
jax: 0.10.0
libtpu: 0.0.40
codegen_flags: <defaults>
</compile_context>

<pallas_src>
import functools

import jax
import jax.numpy as jnp
from jax import lax
from jax.experimental import pallas as pl
from jax.experimental.pallas import tpu as pltpu

IGNORE_LABEL = 255.0

COLS = 512                       # lane-dense slab width (multiple of 128)
MAX_BLOCK_ROWS = 2048            # 2048 x 512 f32 = 4 MiB per input block
ROW_SPLIT = 2                    # leading "parallel" axis over row-block groups (v7x 2-TC)
VMEM_LIMIT_BYTES = 48 * 1024 * 1024


def _round_up(x, m):
    return ((x + m - 1) // m) * m


def _cdiv(a, b):
    return (a + b - 1) // b


def _bce_masked_kernel(pred_ref, targ_ref, sum_ref, cnt_ref, *,
                       rows_true, block_rows, blocks_per_group, need_row_mask):
    """Accumulate masked BCE-with-logits partial sums / valid counts.

    pred_ref / targ_ref : (block_rows, COLS) tiles in VMEM (native dtype)
    sum_ref / cnt_ref   : (1, 8, COLS) f32 output blocks, resident across the k axis
    """
    s = pl.program_id(0)   # row-group axis ("parallel"; can shard across v7x TCs)
    k = pl.program_id(1)   # row-block-within-group axis ("arbitrary" reduction)

    @pl.when(k == 0)
    def _init():
        sum_ref[...] = jnp.zeros_like(sum_ref)
        cnt_ref[...] = jnp.zeros_like(cnt_ref)

    x = pred_ref[...].astype(jnp.float32)
    y = targ_ref[...].astype(jnp.float32)

    # target_mask = (target >= 0) & (target != ignore_label)
    base_valid = jnp.logical_and(y >= 0.0, y != IGNORE_LABEL)

    def accumulate(valid):
        m = valid.astype(jnp.float32)                     # single f32 mask: count + zeroing
        # Numerically stable BCE with logits: max(x,0) - x*y + log1p(exp(-|x|))
        loss = jnp.maximum(x, 0.0) - x * y + jnp.log1p(jnp.exp(-jnp.abs(x)))
        # select (not loss*m): NaN/Inf in masked or undefined boundary-padding slots must
        # not leak into the sum (NaN * 0 == NaN).
        loss = jnp.where(valid, loss, 0.0)
        cols = loss.shape[-1]
        # Fold the row block into (n, 8, cols) sublane groups and do VPU adds into the
        # resident output accumulators; the cross-lane reduce over the tiny
        # (row_split, 8, COLS) partials is paid once in the wrapper.
        sum_ref[0] += loss.reshape(-1, 8, cols).sum(axis=0)
        cnt_ref[0] += m.reshape(-1, 8, cols).sum(axis=0)

    if not need_row_mask:
        # Rows tile evenly into blocks and groups: no Pallas boundary padding and no
        # duplicated overflow block, so the per-element row-bound mask is statically elided
        # (saves ~3 VPU ops/element in the VALU-bound regimes: v7x, bf16-on-v6e).
        accumulate(base_valid)
    else:
        row_start = (s * blocks_per_group + k) * block_rows   # logical start row (scalar)
        is_interior = row_start + block_rows <= rows_true

        @pl.when(is_interior)
        def _interior_block():
            accumulate(base_valid)

        @pl.when(jnp.logical_not(is_interior))
        def _boundary_block():
            # Rows at/after `rows_true` are Pallas boundary padding (undefined contents) or
            # belong to a clamped duplicate block; mask them.  Compare the iota against the
            # scalar remainder instead of materializing absolute row indices.
            rem = rows_true - row_start        # <= 0 for a duplicated overflow block
            row_ok = lax.broadcasted_iota(jnp.int32, x.shape, 0) < rem
            accumulate(jnp.logical_and(base_valid, row_ok))


@functools.partial(jax.jit, static_argnames=("size_average", "max_block_rows"))
def bce_with_logits_loss_2d(predict, target, size_average=True,
                            max_block_rows=MAX_BLOCK_ROWS):
    """predict, target: (n, 1, h, w). Returns scalar loss (float32).

    Matches PyTorch BCEWithLogitsLoss2d with weight=None:
      - masks out target < 0 and target == 255
      - mean over valid elements if size_average else sum
      - returns 0.0 if no valid elements
    Inputs may be bf16/f32 (target labels 0/1/255/-1 are exact in bf16); the kernel
    streams them in their native dtype and upcasts in VMEM.
    """
    # TODO(synk): per-class `weight` rescaling is not implemented (module default weight=None).
    assert predict.ndim == 4 and target.ndim == 4
    assert predict.shape == target.shape

    n_elems = predict.size
    p = predict.reshape(-1)
    t = target.reshape(-1)

    rows = max(1, _cdiv(n_elems, COLS))
    pad = rows * COLS - n_elems
    if pad:
        # Only hit for ragged sizes (n*h*w not a multiple of 512); typical segmentation
        # shapes skip this copy entirely.  Padded targets get -1 so they fail `y >= 0`.
        p = jnp.pad(p, (0, pad))
        t = jnp.pad(t, (0, pad), constant_values=-1)
    p = p.reshape(rows, COLS)
    t = t.reshape(rows, COLS)

    # Row-block size: large (amortizes ~0.35 us/step, HBM-roofline DMAs), rounded to 32 so
    # f32/bf16 sublane tiling and the in-kernel (-1, 8, COLS) fold hold.
    block_rows = min(max_block_rows, _round_up(rows, 32))
    num_row_blocks = _cdiv(rows, block_rows)

    # Megacore split over contiguous groups of ROW blocks (full-width contiguous tiles).
    row_split = min(ROW_SPLIT, num_row_blocks)
    blocks_per_group = _cdiv(num_row_blocks, row_split)
    total_blocks = row_split * blocks_per_group
    need_row_mask = (rows % block_rows != 0) or (total_blocks != num_row_blocks)

    if total_blocks > num_row_blocks:
        # The last group overshoots by one block; clamp it onto the last real block (its
        # contribution is zeroed by the in-kernel row mask).  Keeps DMA in bounds.
        def block_index(s, k):
            return jnp.minimum(s * blocks_per_group + k, num_row_blocks - 1)
    else:
        def block_index(s, k):
            return s * blocks_per_group + k

    in_spec = pl.BlockSpec((block_rows, COLS), lambda s, k: (block_index(s, k), 0))
    out_spec = pl.BlockSpec((1, 8, COLS), lambda s, k: (s, 0, 0))

    kernel = functools.partial(
        _bce_masked_kernel,
        rows_true=rows,
        block_rows=block_rows,
        blocks_per_group=blocks_per_group,
        need_row_mask=need_row_mask,
    )

    part_sum, part_cnt = pl.pallas_call(
        kernel,
        out_shape=(
            jax.ShapeDtypeStruct((row_split, 8, COLS), jnp.float32),
            jax.ShapeDtypeStruct((row_split, 8, COLS), jnp.float32),
        ),
        grid_spec=pltpu.PrefetchScalarGridSpec(
            num_scalar_prefetch=0,
            grid=(row_split, blocks_per_group),
            in_specs=[in_spec, in_spec],
            out_specs=(out_spec, out_spec),
        ),
        compiler_params=pltpu.CompilerParams(
            dimension_semantics=("parallel", "arbitrary"),
            vmem_limit_bytes=VMEM_LIMIT_BYTES,
        ),
    )(p, t)

    # Tiny final reduction over the (row_split, 8, 512) partials.  Each count slot holds
    # <= rows/8 ones, far below 2^24, so the f32 count is exact for realistic sizes.
    s = jnp.sum(part_sum)
    c = jnp.sum(part_cnt)
    if size_average:
        return jnp.where(c > 0, s / jnp.maximum(c, 1.0), jnp.float32(0.0))
    return jnp.where(c > 0, s, jnp.float32(0.0))


def _reference_loss(predict, target, size_average=True):
    """Pure-JAX reference for verification."""
    p = predict.astype(jnp.float32)
    t = target.astype(jnp.float32)
    valid = jnp.logical_and(t >= 0.0, t != IGNORE_LABEL)
    loss = jnp.maximum(p, 0.0) - p * t + jnp.log1p(jnp.exp(-jnp.abs(p)))
    loss = jnp.where(valid, loss, 0.0)
    c = jnp.sum(valid.astype(jnp.float32))
    s = jnp.sum(loss)
    if size_average:
        return jnp.where(c > 0, s / jnp.maximum(c, 1.0), 0.0)
    return jnp.where(c > 0, s, 0.0)


if __name__ == "__main__":
    key = jax.random.PRNGKey(0)
    k1, k2, k3, k4, k5, k6 = jax.random.split(key, 6)

    # Case 1: (2, 1, 16, 16) f32 with ignore labels — mean and sum reductions.
    n, c, h, w = 2, 1, 16, 16
    predict = jax.random.normal(k1, (n, c, h, w), dtype=jnp.float32)
    target = jax.random.bernoulli(k2, 0.5, (n, c, h, w)).astype(jnp.float32)
    ignore_mask = jax.random.bernoulli(k3, 0.2, (n, c, h, w))
    target = jnp.where(ignore_mask, jnp.float32(IGNORE_LABEL), target)

    loss = jax.block_until_ready(bce_with_logits_loss_2d(predict, target, size_average=True))
    ref = _reference_loss(predict, target, size_average=True)
    assert jnp.allclose(loss, ref, rtol=1e-5, atol=1e-6), (loss, ref)

    loss_s = jax.block_until_ready(bce_with_logits_loss_2d(predict, target, size_average=False))
    ref_s = _reference_loss(predict, target, size_average=False)
    assert jnp.allclose(loss_s, ref_s, rtol=1e-5, atol=1e-5), (loss_s, ref_s)

    # Case 2: ragged (1, 1, 7, 9) with bf16 logits AND bf16 targets — exercises the
    # column-tail padding, the in-kernel boundary mask, and native low-precision streaming.
    predict2 = jax.random.normal(k4, (1, 1, 7, 9), dtype=jnp.float32).astype(jnp.bfloat16)
    target2 = jax.random.bernoulli(k2, 0.5, (1, 1, 7, 9)).astype(jnp.bfloat16)
    loss2 = jax.block_until_ready(bce_with_logits_loss_2d(predict2, target2, size_average=True))
    ref2 = _reference_loss(predict2, target2, size_average=True)
    assert jnp.allclose(loss2, ref2, rtol=1e-5, atol=1e-6), (loss2, ref2)

    # Case 3: all pixels ignored -> loss must be exactly 0.
    target3 = jnp.full((n, c, h, w), IGNORE_LABEL, dtype=jnp.float32)
    loss3 = jax.block_until_ready(bce_with_logits_loss_2d(predict, target3, size_average=True))
    assert jnp.allclose(loss3, 0.0), loss3

    # Case 4: (2, 1, 96, 256) with a small block override -> 3 row blocks split across the
    # 2-group "parallel" axis (clamped duplicate overflow block + pl.when boundary path).
    predict4 = jax.random.normal(k5, (2, 1, 96, 256), dtype=jnp.float32)
    target4 = jax.random.bernoulli(k6, 0.5, (2, 1, 96, 256)).astype(jnp.float32)
    ignore4 = jax.random.bernoulli(k3, 0.3, (2, 1, 96, 256))
    target4 = jnp.where(ignore4, jnp.float32(IGNORE_LABEL), target4)
    loss4 = jax.block_until_ready(
        bce_with_logits_loss_2d(predict4, target4, size_average=True, max_block_rows=32))
    ref4 = _reference_loss(predict4, target4, size_average=True)
    assert jnp.allclose(loss4, ref4, rtol=1e-4, atol=1e-5), (loss4, ref4)

    # Case 5: (2, 1, 64, 256) aligned multi-block -> statically elided row mask + row split.
    predict5 = jax.random.normal(k6, (2, 1, 64, 256), dtype=jnp.float32)
    target5 = jax.random.bernoulli(k5, 0.5, (2, 1, 64, 256)).astype(jnp.float32)
    loss5 = jax.block_until_ready(
        bce_with_logits_loss_2d(predict5, target5, size_average=False, max_block_rows=32))
    ref5 = _reference_loss(predict5, target5, size_average=False)
    assert jnp.allclose(loss5, ref5, rtol=1e-4, atol=1e-3), (loss5, ref5)

    # Case 6: ragged multi-block (1, 1, 130, 130) -> partial last row block + tail mask.
    predict6 = jax.random.normal(k1, (1, 1, 130, 130), dtype=jnp.float32)
    target6 = jax.random.bernoulli(k4, 0.5, (1, 1, 130, 130)).astype(jnp.float32)
    loss6 = jax.block_until_ready(
        bce_with_logits_loss_2d(predict6, target6, size_average=True, max_block_rows=32))
    ref6 = _reference_loss(predict6, target6, size_average=True)
    assert jnp.allclose(loss6, ref6, rtol=1e-4, atol=1e-5), (loss6, ref6)

    print("KERNEL_OK")
</pallas_src>

<mosaic_0001>
module attributes {stable_mosaic.version = 11 : i64} {
  func.func @_bce_masked_kernel(%arg0: i32, %arg1: i32, %arg2: memref<32x512xf32, #tpu.memory_space<vmem>>, %arg3: memref<32x512xf32, #tpu.memory_space<vmem>>, %arg4: memref<1x8x512xf32, #tpu.memory_space<vmem>>, %arg5: memref<1x8x512xf32, #tpu.memory_space<vmem>>) attributes {dimension_semantics = [#tpu.dimension_semantics<parallel>, #tpu.dimension_semantics<arbitrary>], iteration_bounds = array<i64: 1, 1>, scalar_prefetch = 0 : i64, scratch_operands = 0 : i64, tpu.core_type = #tpu.core_type<tc>, window_params = [{transform_indices = @transform_0, window_bounds = array<i64: 32, 512>}, {transform_indices = @transform_1, window_bounds = array<i64: 32, 512>}, {transform_indices = @transform_2, window_bounds = array<i64: 1, 8, 512>}, {transform_indices = @transform_3, window_bounds = array<i64: 1, 8, 512>}]} {
    %c0_i32 = arith.constant 0 : i32
    %0 = arith.cmpi eq, %arg1, %c0_i32 : i32
    %1 = arith.extui %0 : i1 to i32
    %c0_i32_0 = arith.constant 0 : i32
    %2 = arith.cmpi ne, %1, %c0_i32_0 : i32
    scf.if %2 {
      %cst_9 = arith.constant 0.000000e+00 : f32
      %20 = vector.broadcast %cst_9 : f32 to vector<1x8x512xf32>
      %c0_10 = arith.constant 0 : index
      %c0_11 = arith.constant 0 : index
      %c0_12 = arith.constant 0 : index
      %21 = vector.load %arg4[%c0_10, %c0_11, %c0_12] : memref<1x8x512xf32, #tpu.memory_space<vmem>>, vector<1x8x512xf32>
      tpu.vector_store %arg4[%c0_10, %c0_11, %c0_12], %20 {strides = array<i32>} : memref<1x8x512xf32, #tpu.memory_space<vmem>>, vector<1x8x512xf32>,
      %cst_13 = arith.constant 0.000000e+00 : f32
      %22 = vector.broadcast %cst_13 : f32 to vector<1x8x512xf32>
      %c0_14 = arith.constant 0 : index
      %c0_15 = arith.constant 0 : index
      %c0_16 = arith.constant 0 : index
      %23 = vector.load %arg5[%c0_14, %c0_15, %c0_16] : memref<1x8x512xf32, #tpu.memory_space<vmem>>, vector<1x8x512xf32>
      tpu.vector_store %arg5[%c0_14, %c0_15, %c0_16], %22 {strides = array<i32>} : memref<1x8x512xf32, #tpu.memory_space<vmem>>, vector<1x8x512xf32>,
    } else {
    }
    %c0 = arith.constant 0 : index
    %c0_1 = arith.constant 0 : index
    %3 = vector.load %arg2[%c0, %c0_1] : memref<32x512xf32, #tpu.memory_space<vmem>>, vector<32x512xf32>
    %c0_2 = arith.constant 0 : index
    %c0_3 = arith.constant 0 : index
    %4 = vector.load %arg3[%c0_2, %c0_3] : memref<32x512xf32, #tpu.memory_space<vmem>>, vector<32x512xf32>
    %cst = arith.constant 0.000000e+00 : f32
    %5 = vector.broadcast %cst : f32 to vector<32x512xf32>
    %6 = arith.cmpf oge, %4, %5 : vector<32x512xf32>
    %cst_4 = arith.constant 2.550000e+02 : f32
    %7 = vector.broadcast %cst_4 : f32 to vector<32x512xf32>
    %8 = arith.cmpf one, %4, %7 : vector<32x512xf32>
    %9 = arith.andi %6, %8 : vector<32x512xi1>
    %c1_i32 = arith.constant 1 : i32
    %10 = arith.muli %arg0, %c1_i32 : i32
    %11 = arith.addi %10, %arg1 : i32
    %c32_i32 = arith.constant 32 : i32
    %12 = arith.muli %11, %c32_i32 : i32
    %c32_i32_5 = arith.constant 32 : i32
    %13 = arith.addi %12, %c32_i32_5 : i32
    %c1_i32_6 = arith.constant 1 : i32
    %14 = arith.cmpi sle, %13, %c1_i32_6 : i32
    %15 = arith.extui %14 : i1 to i32
    %c0_i32_7 = arith.constant 0 : i32
    %16 = arith.cmpi ne, %15, %c0_i32_7 : i32
    scf.if %16 {
      %20 = arith.extui %9 : vector<32x512xi1> to vector<32x512xi32>
      %21 = arith.sitofp %20 : vector<32x512xi32> to vector<32x512xf32>
      %cst_9 = arith.constant 0.000000e+00 : f32
      %22 = vector.broadcast %cst_9 : f32 to vector<32x512xf32>
      %23 = arith.maximumf %3, %22 : vector<32x512xf32>
      %24 = arith.mulf %3, %4 : vector<32x512xf32>
      %25 = arith.subf %23, %24 : vector<32x512xf32>
      %26 = math.absf %3 : vector<32x512xf32>
      %cst_10 = arith.constant 0.000000e+00 : f32
      %27 = vector.broadcast %cst_10 : f32 to vector<32x512xf32>
      %28 = arith.subf %27, %26 : vector<32x512xf32>
      %29 = math.exp %28 : vector<32x512xf32>
      %30 = math.log1p %29 : vector<32x512xf32>
      %31 = arith.addf %25, %30 : vector<32x512xf32>
      %cst_11 = arith.constant 0.000000e+00 : f32
      %32 = vector.broadcast %cst_11 : f32 to vector<32x512xf32>
      %33 = arith.select %9, %31, %32 : vector<32x512xi1>, vector<32x512xf32>
      %c0_12 = arith.constant 0 : index
      %c0_13 = arith.constant 0 : index
      %c0_14 = arith.constant 0 : index
      %34 = vector.load %arg4[%c0_12, %c0_13, %c0_14] : memref<1x8x512xf32, #tpu.memory_space<vmem>>, vector<1x8x512xf32>
      %35 = vector.shape_cast %34 : vector<1x8x512xf32> to vector<8x512xf32>
      %36 = vector.shape_cast %33 : vector<32x512xf32> to vector<4x8x512xf32>
      %cst_15 = arith.constant dense<0.000000e+00> : vector<8x512xf32>
      %37 = vector.multi_reduction <add>, %36, %cst_15 [0] : vector<4x8x512xf32> to vector<8x512xf32>
      %38 = arith.addf %35, %37 : vector<8x512xf32>
      %c0_16 = arith.constant 0 : index
      %c0_17 = arith.constant 0 : index
      %c0_18 = arith.constant 0 : index
      %39 = vector.load %arg4[%c0_16, %c0_17, %c0_18] : memref<1x8x512xf32, #tpu.memory_space<vmem>>, vector<1x8x512xf32>
      %40 = vector.shape_cast %39 : vector<1x8x512xf32> to vector<8x512xf32>
      %41 = vector.shape_cast %38 : vector<8x512xf32> to vector<1x8x512xf32>
      tpu.vector_store %arg4[%c0_16, %c0_17, %c0_18], %41 {strides = array<i32>} : memref<1x8x512xf32, #tpu.memory_space<vmem>>, vector<1x8x512xf32>,
      %c0_19 = arith.constant 0 : index
      %c0_20 = arith.constant 0 : index
      %c0_21 = arith.constant 0 : index
      %42 = vector.load %arg5[%c0_19, %c0_20, %c0_21] : memref<1x8x512xf32, #tpu.memory_space<vmem>>, vector<1x8x512xf32>
      %43 = vector.shape_cast %42 : vector<1x8x512xf32> to vector<8x512xf32>
      %44 = vector.shape_cast %21 : vector<32x512xf32> to vector<4x8x512xf32>
      %cst_22 = arith.constant dense<0.000000e+00> : vector<8x512xf32>
      %45 = vector.multi_reduction <add>, %44, %cst_22 [0] : vector<4x8x512xf32> to vector<8x512xf32>
      %46 = arith.addf %43, %45 : vector<8x512xf32>
      %c0_23 = arith.constant 0 : index
      %c0_24 = arith.constant 0 : index
      %c0_25 = arith.constant 0 : index
      %47 = vector.load %arg5[%c0_23, %c0_24, %c0_25] : memref<1x8x512xf32, #tpu.memory_space<vmem>>, vector<1x8x512xf32>
      %48 = vector.shape_cast %47 : vector<1x8x512xf32> to vector<8x512xf32>
      %49 = vector.shape_cast %46 : vector<8x512xf32> to vector<1x8x512xf32>
      tpu.vector_store %arg5[%c0_23, %c0_24, %c0_25], %49 {strides = array<i32>} : memref<1x8x512xf32, #tpu.memory_space<vmem>>, vector<1x8x512xf32>,
    } else {
    }
    %true = arith.constant true
    %17 = arith.xori %14, %true : i1
    %18 = arith.extui %17 : i1 to i32
    %c0_i32_8 = arith.constant 0 : i32
    %19 = arith.cmpi ne, %18, %c0_i32_8 : i32
    scf.if %19 {
      %c1_i32_9 = arith.constant 1 : i32
      %20 = arith.subi %c1_i32_9, %12 : i32
      %21 = tpu.iota {dimensions = array<i32: 0>} : vector<32x512xi32>
      %22 = vector.broadcast %20 : i32 to vector<32x512xi32>
      %23 = arith.cmpi slt, %21, %22 : vector<32x512xi32>
      %24 = arith.andi %9, %23 : vector<32x512xi1>
      %25 = arith.extui %24 : vector<32x512xi1> to vector<32x512xi32>
      %26 = arith.sitofp %25 : vector<32x512xi32> to vector<32x512xf32>
      %cst_10 = arith.constant 0.000000e+00 : f32
      %27 = vector.broadcast %cst_10 : f32 to vector<32x512xf32>
      %28 = arith.maximumf %3, %27 : vector<32x512xf32>
      %29 = arith.mulf %3, %4 : vector<32x512xf32>
      %30 = arith.subf %28, %29 : vector<32x512xf32>
      %31 = math.absf %3 : vector<32x512xf32>
      %cst_11 = arith.constant 0.000000e+00 : f32
      %32 = vector.broadcast %cst_11 : f32 to vector<32x512xf32>
      %33 = arith.subf %32, %31 : vector<32x512xf32>
      %34 = math.exp %33 : vector<32x512xf32>
      %35 = math.log1p %34 : vector<32x512xf32>
      %36 = arith.addf %30, %35 : vector<32x512xf32>
      %cst_12 = arith.constant 0.000000e+00 : f32
      %37 = vector.broadcast %cst_12 : f32 to vector<32x512xf32>
      %38 = arith.select %24, %36, %37 : vector<32x512xi1>, vector<32x512xf32>
      %c0_13 = arith.constant 0 : index
      %c0_14 = arith.constant 0 : index
      %c0_15 = arith.constant 0 : index
      %39 = vector.load %arg4[%c0_13, %c0_14, %c0_15] : memref<1x8x512xf32, #tpu.memory_space<vmem>>, vector<1x8x512xf32>
      %40 = vector.shape_cast %39 : vector<1x8x512xf32> to vector<8x512xf32>
      %41 = vector.shape_cast %38 : vector<32x512xf32> to vector<4x8x512xf32>
      %cst_16 = arith.constant dense<0.000000e+00> : vector<8x512xf32>
      %42 = vector.multi_reduction <add>, %41, %cst_16 [0] : vector<4x8x512xf32> to vector<8x512xf32>
      %43 = arith.addf %40, %42 : vector<8x512xf32>
      %c0_17 = arith.constant 0 : index
      %c0_18 = arith.constant 0 : index
      %c0_19 = arith.constant 0 : index
      %44 = vector.load %arg4[%c0_17, %c0_18, %c0_19] : memref<1x8x512xf32, #tpu.memory_space<vmem>>, vector<1x8x512xf32>
      %45 = vector.shape_cast %44 : vector<1x8x512xf32> to vector<8x512xf32>
      %46 = vector.shape_cast %43 : vector<8x512xf32> to vector<1x8x512xf32>
      tpu.vector_store %arg4[%c0_17, %c0_18, %c0_19], %46 {strides = array<i32>} : memref<1x8x512xf32, #tpu.memory_space<vmem>>, vector<1x8x512xf32>,
      %c0_20 = arith.constant 0 : index
      %c0_21 = arith.constant 0 : index
      %c0_22 = arith.constant 0 : index
      %47 = vector.load %arg5[%c0_20, %c0_21, %c0_22] : memref<1x8x512xf32, #tpu.memory_space<vmem>>, vector<1x8x512xf32>
      %48 = vector.shape_cast %47 : vector<1x8x512xf32> to vector<8x512xf32>
      %49 = vector.shape_cast %26 : vector<32x512xf32> to vector<4x8x512xf32>
      %cst_23 = arith.constant dense<0.000000e+00> : vector<8x512xf32>
      %50 = vector.multi_reduction <add>, %49, %cst_23 [0] : vector<4x8x512xf32> to vector<8x512xf32>
      %51 = arith.addf %48, %50 : vector<8x512xf32>
      %c0_24 = arith.constant 0 : index
      %c0_25 = arith.constant 0 : index
      %c0_26 = arith.constant 0 : index
      %52 = vector.load %arg5[%c0_24, %c0_25, %c0_26] : memref<1x8x512xf32, #tpu.memory_space<vmem>>, vector<1x8x512xf32>
      %53 = vector.shape_cast %52 : vector<1x8x512xf32> to vector<8x512xf32>
      %54 = vector.shape_cast %51 : vector<8x512xf32> to vector<1x8x512xf32>
      tpu.vector_store %arg5[%c0_24, %c0_25, %c0_26], %54 {strides = array<i32>} : memref<1x8x512xf32, #tpu.memory_space<vmem>>, vector<1x8x512xf32>,
    } else {
    }
    return
  }
  func.func @transform_0(%arg0: i32, %arg1: i32) -> (i32, i32) {
    %c1_i32 = arith.constant 1 : i32
    %0 = arith.muli %arg0, %c1_i32 : i32
    %1 = arith.addi %0, %arg1 : i32
    %c0_i32 = arith.constant 0 : i32
    %c0_i32_0 = arith.constant 0 : i32
    return %1, %c0_i32 : i32, i32
  }
  func.func @transform_1(%arg0: i32, %arg1: i32) -> (i32, i32) {
    %c1_i32 = arith.constant 1 : i32
    %0 = arith.muli %arg0, %c1_i32 : i32
    %1 = arith.addi %0, %arg1 : i32
    %c0_i32 = arith.constant 0 : i32
    %c0_i32_0 = arith.constant 0 : i32
    return %1, %c0_i32 : i32, i32
  }
  func.func @transform_2(%arg0: i32, %arg1: i32) -> (i32, i32, i32) {
    %c0_i32 = arith.constant 0 : i32
    %c0_i32_0 = arith.constant 0 : i32
    %c0_i32_1 = arith.constant 0 : i32
    return %arg0, %c0_i32, %c0_i32_0 : i32, i32, i32
  }
  func.func @transform_3(%arg0: i32, %arg1: i32) -> (i32, i32, i32) {
    %c0_i32 = arith.constant 0 : i32
    %c0_i32_0 = arith.constant 0 : i32
    %c0_i32_1 = arith.constant 0 : i32
    return %arg0, %c0_i32, %c0_i32_0 : i32, i32, i32
  }
}

</mosaic_0001>

<llo_original>
// kernel: bce_with_logits_loss_2d.1
$region0: #{bce_with_logits_loss_2d.1}
  #allocation0 [shape = 'u32[]', space=smem, size = 0x4, offset = 0x4, fixed_abs, tag = 'smem constant byte address 0x4 - core index']
  #allocation1 [shape = 'u32[72,128]{1,0:T(1,128)}', space=vmem, size = 0x9000, scoped, tag = 'internal scratch']
  %s0 = inlined_call_operand.vmem [shape: f32[1,512], index: 0, kind: input, shape index: {}]
  %s1 = inlined_call_operand.vmem [shape: f32[1,512], index: 1, kind: input, shape index: {}]
  %s2 = inlined_call_operand.vmem [shape: f32[1,8,512], index: 2, kind: output, shape index: {0}]
  %s3 = inlined_call_operand.vmem [shape: f32[1,8,512], index: 3, kind: output, shape index: {1}]
  %4 = xla_tuple %s2, %s3
  %s5 = sld [smem:[#allocation0]]
  $region38: #{bce_with_logits_loss_2d.1} parent=0
    _
  %s7 = ssub.s32 1, %s5
  %s8 = scalar_select 0, %s7, %s5
  // Predicated region
  $region2: #{bce_with_logits_loss_2d.1} parent=0 // pred_check
    _
  $region3: #{bce_with_logits_loss_2d.1} parent=0 // pred_check_branch
    %10 = sbr.rel (0) target = $region5
  $region4: #{bce_with_logits_loss_2d.1} parent=0 // pred_region
    %s11 = sadd.s32 0, 0
    %s12 = smul.u32 32, %s11
    %s13 = ssub.s32 1, %s12
    %s14 = smul.u32 %s13, 4
    %p15 = scmp.lt.s32.totalorder %s12, 0
    %s16 = scalar_select %p15, %s12, 0
    %s17 = smul.addr %s16, 4
    %s18 = scalar_lea.vmem %s0, %s17
    %s19 = sadd.s32 0, 0
    %s20 = smul.u32 32, %s19
    %s21 = ssub.s32 1, %s20
    %s22 = smul.u32 %s21, 4
  $region5: #{bce_with_logits_loss_2d.1} parent=0 // pred_fallthru
    _
  // Predicated region
  $region6: #{bce_with_logits_loss_2d.1} parent=0 // pred_check
    _
  $region7: #{bce_with_logits_loss_2d.1} parent=0 // pred_check_branch
    %24 = sbr.rel (0) target = $region9
  $region8: #{bce_with_logits_loss_2d.1} parent=0 // pred_region
    %s25 = sadd.s32 0, 0
    %s26 = smul.u32 32, %s25
    %s27 = ssub.s32 1, %s26
    %s28 = smul.u32 %s27, 4
    %p29 = scmp.lt.s32.totalorder %s26, 0
    %s30 = scalar_select %p29, %s26, 0
    %s31 = smul.addr %s30, 4
    %s32 = scalar_lea.vmem %s1, %s31
    %s33 = sadd.s32 0, 0
    %s34 = smul.u32 32, %s33
    %s35 = ssub.s32 1, %s34
    %s36 = smul.u32 %s35, 4
  $region9: #{bce_with_logits_loss_2d.1} parent=0 // pred_fallthru
    _
  %s37 = sadd.s32 0, 0
  %s38 = smul.u32 32, %s37
  %s39 = ssub.s32 1, %s38
  %s40 = smul.u32 %s39, 4
  %p41 = scmp.lt.s32.totalorder %s38, 0
  %s42 = scalar_select %p41, %s38, 0
  %s43 = smul.addr %s42, 4
  %s44 = scalar_lea.vmem %s0, %s43
  %s45 = sadd.s32 0, 0
  %s46 = smul.u32 32, %s45
  %s47 = ssub.s32 1, %s46
  %s48 = smul.u32 %s47, 4
  %p49 = scmp.lt.s32.totalorder %s46, 0
  %s50 = scalar_select %p49, %s46, 0
  %s51 = smul.addr %s50, 4
  %s52 = scalar_lea.vmem %s1, %s51
  %s53 = sadd.s32 0, 0
  %s54 = smul.u32 32, %s53
  %s55 = ssub.s32 1, %s54
  %s56 = smul.u32 %s55, 4
  %p57 = scmp.lt.s32.totalorder %s54, 0
  %s58 = scalar_select %p57, %s54, 0
  %s59 = smul.addr %s58, 4
  %s60 = scalar_lea.vmem %s0, %s59
  %s61 = sadd.s32 0, 0
  %s62 = smul.u32 32, %s61
  %s63 = ssub.s32 1, %s62
  %s64 = smul.u32 %s63, 4
  %s65 = sadd.s32 0, 0
  %s66 = smul.u32 32, %s65
  %s67 = ssub.s32 1, %s66
  %s68 = smul.u32 %s67, 4
  %p69 = scmp.lt.s32.totalorder %s66, 0
  %s70 = scalar_select %p69, %s66, 0
  %s71 = smul.addr %s70, 4
  %s72 = scalar_lea.vmem %s1, %s71
  %s73 = sadd.s32 0, 0
  %s74 = smul.u32 32, %s73
  %s75 = ssub.s32 1, %s74
  %s76 = smul.u32 %s75, 4
  %p77 = scmp.eq.s32.totalorder 0, 0
  // Predicated region
  $region10: #{bce_with_logits_loss_2d.1} parent=0 // pred_check
    %p78 = pneg %p77
  $region11: #{bce_with_logits_loss_2d.1} parent=0 // pred_check_branch
    %80 = sbr.rel (%p78) target = $region13
  $region12: #{bce_with_logits_loss_2d.1} parent=0 // pred_region
    %81 = vst [vmem:[%s2] sm:$0xff] 0.0
    %82 = vst [vmem:[%s2 + $0x8] sm:$0xff] 0.0
    %83 = vst [vmem:[%s2 + $0x10] sm:$0xff] 0.0
    %84 = vst [vmem:[%s2 + $0x18] sm:$0xff] 0.0
    %85 = vst [vmem:[%s3] sm:$0xff] 0.0
    %86 = vst [vmem:[%s3 + $0x8] sm:$0xff] 0.0
    %87 = vst [vmem:[%s3 + $0x10] sm:$0xff] 0.0
    %88 = vst [vmem:[%s3 + $0x18] sm:$0xff] 0.0
  $region13: #{bce_with_logits_loss_2d.1} parent=0 // pred_fallthru
    _
  %v89 = vld [vmem:[%s60] sm:$0xf]
  %v90 = vld [vmem:[%s60 + $0x4] sm:$0xf]
  %v91 = vld [vmem:[%s60 + $0x8] sm:$0xf]
  %v92 = vld [vmem:[%s60 + $0xc] sm:$0xf]
  %v93 = vld [vmem:[%s60 + $0x10] sm:$0xf]
  %v94 = vld [vmem:[%s60 + $0x14] sm:$0xf]
  %v95 = vld [vmem:[%s60 + $0x18] sm:$0xf]
  %v96 = vld [vmem:[%s60 + $0x1c] sm:$0xf]
  %v97 = vld [vmem:[%s60 + $0x20] sm:$0xf]
  %v98 = vld [vmem:[%s60 + $0x24] sm:$0xf]
  %v99 = vld [vmem:[%s60 + $0x28] sm:$0xf]
  %v100 = vld [vmem:[%s60 + $0x2c] sm:$0xf]
  %v101 = vld [vmem:[%s60 + $0x30] sm:$0xf]
  %v102 = vld [vmem:[%s60 + $0x34] sm:$0xf]
  %v103 = vld [vmem:[%s60 + $0x38] sm:$0xf]
  %v104 = vld [vmem:[%s60 + $0x3c] sm:$0xf]
  %v105 = vld [vmem:[%s60 + $0x40] sm:$0xf]
  %v106 = vld [vmem:[%s60 + $0x44] sm:$0xf]
  %v107 = vld [vmem:[%s60 + $0x48] sm:$0xf]
  %v108 = vld [vmem:[%s60 + $0x4c] sm:$0xf]
  %v109 = vld [vmem:[%s60 + $0x50] sm:$0xf]
  %v110 = vld [vmem:[%s60 + $0x54] sm:$0xf]
  %v111 = vld [vmem:[%s60 + $0x58] sm:$0xf]
  %v112 = vld [vmem:[%s60 + $0x5c] sm:$0xf]
  %v113 = vld [vmem:[%s60 + $0x60] sm:$0xf]
  %v114 = vld [vmem:[%s60 + $0x64] sm:$0xf]
  %v115 = vld [vmem:[%s60 + $0x68] sm:$0xf]
  %v116 = vld [vmem:[%s60 + $0x6c] sm:$0xf]
  %v117 = vld [vmem:[%s60 + $0x70] sm:$0xf]
  %v118 = vld [vmem:[%s60 + $0x74] sm:$0xf]
  %v119 = vld [vmem:[%s60 + $0x78] sm:$0xf]
  %v120 = vld [vmem:[%s60 + $0x7c] sm:$0xf]
  %v121 = vld [vmem:[%s72] sm:$0xf]
  %v122 = vld [vmem:[%s72 + $0x4] sm:$0xf]
  %v123 = vld [vmem:[%s72 + $0x8] sm:$0xf]
  %v124 = vld [vmem:[%s72 + $0xc] sm:$0xf]
  %v125 = vld [vmem:[%s72 + $0x10] sm:$0xf]
  %v126 = vld [vmem:[%s72 + $0x14] sm:$0xf]
  %v127 = vld [vmem:[%s72 + $0x18] sm:$0xf]
  %v128 = vld [vmem:[%s72 + $0x1c] sm:$0xf]
  %v129 = vld [vmem:[%s72 + $0x20] sm:$0xf]
  %v130 = vld [vmem:[%s72 + $0x24] sm:$0xf]
  %v131 = vld [vmem:[%s72 + $0x28] sm:$0xf]
  %v132 = vld [vmem:[%s72 + $0x2c] sm:$0xf]
  %v133 = vld [vmem:[%s72 + $0x30] sm:$0xf]
  %v134 = vld [vmem:[%s72 + $0x34] sm:$0xf]
  %v135 = vld [vmem:[%s72 + $0x38] sm:$0xf]
  %v136 = vld [vmem:[%s72 + $0x3c] sm:$0xf]
  %v137 = vld [vmem:[%s72 + $0x40] sm:$0xf]
  %v138 = vld [vmem:[%s72 + $0x44] sm:$0xf]
  %v139 = vld [vmem:[%s72 + $0x48] sm:$0xf]
  %v140 = vld [vmem:[%s72 + $0x4c] sm:$0xf]
  %v141 = vld [vmem:[%s72 + $0x50] sm:$0xf]
  %v142 = vld [vmem:[%s72 + $0x54] sm:$0xf]
  %v143 = vld [vmem:[%s72 + $0x58] sm:$0xf]
  %v144 = vld [vmem:[%s72 + $0x5c] sm:$0xf]
  %v145 = vld [vmem:[%s72 + $0x60] sm:$0xf]
  %v146 = vld [vmem:[%s72 + $0x64] sm:$0xf]
  %v147 = vld [vmem:[%s72 + $0x68] sm:$0xf]
  %v148 = vld [vmem:[%s72 + $0x6c] sm:$0xf]
  %v149 = vld [vmem:[%s72 + $0x70] sm:$0xf]
  %v150 = vld [vmem:[%s72 + $0x74] sm:$0xf]
  %v151 = vld [vmem:[%s72 + $0x78] sm:$0xf]
  %v152 = vld [vmem:[%s72 + $0x7c] sm:$0xf]
  %vm153 = vcmp.ge.f32.partialorder %v121, 0.0
  %vm154 = vcmp.ge.f32.partialorder %v122, 0.0
  %vm155 = vcmp.ge.f32.partialorder %v123, 0.0
  %vm156 = vcmp.ge.f32.partialorder %v124, 0.0
  %vm157 = vcmp.ge.f32.partialorder %v125, 0.0
  %vm158 = vcmp.ge.f32.partialorder %v126, 0.0
  %vm159 = vcmp.ge.f32.partialorder %v127, 0.0
  %vm160 = vcmp.ge.f32.partialorder %v128, 0.0
  %vm161 = vcmp.ge.f32.partialorder %v129, 0.0
  %vm162 = vcmp.ge.f32.partialorder %v130, 0.0
  %vm163 = vcmp.ge.f32.partialorder %v131, 0.0
  %vm164 = vcmp.ge.f32.partialorder %v132, 0.0
  %vm165 = vcmp.ge.f32.partialorder %v133, 0.0
  %vm166 = vcmp.ge.f32.partialorder %v134, 0.0
  %vm167 = vcmp.ge.f32.partialorder %v135, 0.0
  %vm168 = vcmp.ge.f32.partialorder %v136, 0.0
  %vm169 = vcmp.ge.f32.partialorder %v137, 0.0
  %vm170 = vcmp.ge.f32.partialorder %v138, 0.0
  %vm171 = vcmp.ge.f32.partialorder %v139, 0.0
  %vm172 = vcmp.ge.f32.partialorder %v140, 0.0
  %vm173 = vcmp.ge.f32.partialorder %v141, 0.0
  %vm174 = vcmp.ge.f32.partialorder %v142, 0.0
  %vm175 = vcmp.ge.f32.partialorder %v143, 0.0
  %vm176 = vcmp.ge.f32.partialorder %v144, 0.0
  %vm177 = vcmp.ge.f32.partialorder %v145, 0.0
  %vm178 = vcmp.ge.f32.partialorder %v146, 0.0
  %vm179 = vcmp.ge.f32.partialorder %v147, 0.0
  %vm180 = vcmp.ge.f32.partialorder %v148, 0.0
  %vm181 = vcmp.ge.f32.partialorder %v149, 0.0
  %vm182 = vcmp.ge.f32.partialorder %v150, 0.0
  %vm183 = vcmp.ge.f32.partialorder %v151, 0.0
  %vm184 = vcmp.ge.f32.partialorder %v152, 0.0
  %vm185 = vcmp.ne.f32.partialorder %v121, 255.0
  %vm186 = vcmp.ne.f32.partialorder %v122, 255.0
  %vm187 = vcmp.ne.f32.partialorder %v123, 255.0
  %vm188 = vcmp.ne.f32.partialorder %v124, 255.0
  %vm189 = vcmp.ne.f32.partialorder %v125, 255.0
  %vm190 = vcmp.ne.f32.partialorder %v126, 255.0
  %vm191 = vcmp.ne.f32.partialorder %v127, 255.0
  %vm192 = vcmp.ne.f32.partialorder %v128, 255.0
  %vm193 = vcmp.ne.f32.partialorder %v129, 255.0
  %vm194 = vcmp.ne.f32.partialorder %v130, 255.0
  %vm195 = vcmp.ne.f32.partialorder %v131, 255.0
  %vm196 = vcmp.ne.f32.partialorder %v132, 255.0
  %vm197 = vcmp.ne.f32.partialorder %v133, 255.0
  %vm198 = vcmp.ne.f32.partialorder %v134, 255.0
  %vm199 = vcmp.ne.f32.partialorder %v135, 255.0
  %vm200 = vcmp.ne.f32.partialorder %v136, 255.0
  %vm201 = vcmp.ne.f32.partialorder %v137, 255.0
  %vm202 = vcmp.ne.f32.partialorder %v138, 255.0
  %vm203 = vcmp.ne.f32.partialorder %v139, 255.0
  %vm204 = vcmp.ne.f32.partialorder %v140, 255.0
  %vm205 = vcmp.ne.f32.partialorder %v141, 255.0
  %vm206 = vcmp.ne.f32.partialorder %v142, 255.0
  %vm207 = vcmp.ne.f32.partialorder %v143, 255.0
  %vm208 = vcmp.ne.f32.partialorder %v144, 255.0
  %vm209 = vcmp.ne.f32.partialorder %v145, 255.0
  %vm210 = vcmp.ne.f32.partialorder %v146, 255.0
  %vm211 = vcmp.ne.f32.partialorder %v147, 255.0
  %vm212 = vcmp.ne.f32.partialorder %v148, 255.0
  %vm213 = vcmp.ne.f32.partialorder %v149, 255.0
  %vm214 = vcmp.ne.f32.partialorder %v150, 255.0
  %vm215 = vcmp.ne.f32.partialorder %v151, 255.0
  %vm216 = vcmp.ne.f32.partialorder %v152, 255.0
  %vm217 = vmand %vm153, %vm185
  %vm218 = vmand %vm154, %vm186
  %vm219 = vmand %vm155, %vm187
  %vm220 = vmand %vm156, %vm188
  %vm221 = vmand %vm157, %vm189
  %vm222 = vmand %vm158, %vm190
  %vm223 = vmand %vm159, %vm191
  %vm224 = vmand %vm160, %vm192
  %vm225 = vmand %vm161, %vm193
  %vm226 = vmand %vm162, %vm194
  %vm227 = vmand %vm163, %vm195
  %vm228 = vmand %vm164, %vm196
  %vm229 = vmand %vm165, %vm197
  %vm230 = vmand %vm166, %vm198
  %vm231 = vmand %vm167, %vm199
  %vm232 = vmand %vm168, %vm200
  %vm233 = vmand %vm169, %vm201
  %vm234 = vmand %vm170, %vm202
  %vm235 = vmand %vm171, %vm203
  %vm236 = vmand %vm172, %vm204
  %vm237 = vmand %vm173, %vm205
  %vm238 = vmand %vm174, %vm206
  %vm239 = vmand %vm175, %vm207
  %vm240 = vmand %vm176, %vm208
  %vm241 = vmand %vm177, %vm209
  %vm242 = vmand %vm178, %vm210
  %vm243 = vmand %vm179, %vm211
  %vm244 = vmand %vm180, %vm212
  %vm245 = vmand %vm181, %vm213
  %vm246 = vmand %vm182, %vm214
  %vm247 = vmand %vm183, %vm215
  %vm248 = vmand %vm184, %vm216
  %s249 = sadd.s32 0, 0
  %s250 = smul.u32 %s249, 32
  %s251 = sadd.s32 %s250, 32
  %p252 = scmp.le.s32.totalorder %s251, 1
  // Predicated region
  $region14: #{bce_with_logits_loss_2d.1} parent=0 // pred_check
    %p253 = pneg %p252
  $region15: #{bce_with_logits_loss_2d.1} parent=0 // pred_check_branch
    %255 = sbr.rel (%p253) target = $region17
  $region16: #{bce_with_logits_loss_2d.1} parent=0 // pred_region
    %v256 = vsel %vm217, 1, 0
    %v257 = vsel %vm218, 1, 0
    %v258 = vsel %vm219, 1, 0
    %v259 = vsel %vm220, 1, 0
    %v260 = vsel %vm221, 1, 0
    %v261 = vsel %vm222, 1, 0
    %v262 = vsel %vm223, 1, 0
    %v263 = vsel %vm224, 1, 0
    %v264 = vsel %vm225, 1, 0
    %v265 = vsel %vm226, 1, 0
    %v266 = vsel %vm227, 1, 0
    %v267 = vsel %vm228, 1, 0
    %v268 = vsel %vm229, 1, 0
    %v269 = vsel %vm230, 1, 0
    %v270 = vsel %vm231, 1, 0
    %v271 = vsel %vm232, 1, 0
    %v272 = vsel %vm233, 1, 0
    %v273 = vsel %vm234, 1, 0
    %v274 = vsel %vm235, 1, 0
    %v275 = vsel %vm236, 1, 0
    %v276 = vsel %vm237, 1, 0
    %v277 = vsel %vm238, 1, 0
    %v278 = vsel %vm239, 1, 0
    %v279 = vsel %vm240, 1, 0
    %v280 = vsel %vm241, 1, 0
    %v281 = vsel %vm242, 1, 0
    %v282 = vsel %vm243, 1, 0
    %v283 = vsel %vm244, 1, 0
    %v284 = vsel %vm245, 1, 0
    %v285 = vsel %vm246, 1, 0
    %v286 = vsel %vm247, 1, 0
    %v287 = vsel %vm248, 1, 0
    %v288 = vcvt.s32.f32 %v256
    %v289 = vcvt.s32.f32 %v257
    %v290 = vcvt.s32.f32 %v258
    %v291 = vcvt.s32.f32 %v259
    %v292 = vcvt.s32.f32 %v260
    %v293 = vcvt.s32.f32 %v261
    %v294 = vcvt.s32.f32 %v262
    %v295 = vcvt.s32.f32 %v263
    %v296 = vcvt.s32.f32 %v264
    %v297 = vcvt.s32.f32 %v265
    %v298 = vcvt.s32.f32 %v266
    %v299 = vcvt.s32.f32 %v267
    %v300 = vcvt.s32.f32 %v268
    %v301 = vcvt.s32.f32 %v269
    %v302 = vcvt.s32.f32 %v270
    %v303 = vcvt.s32.f32 %v271
    %v304 = vcvt.s32.f32 %v272
    %v305 = vcvt.s32.f32 %v273
    %v306 = vcvt.s32.f32 %v274
    %v307 = vcvt.s32.f32 %v275
    %v308 = vcvt.s32.f32 %v276
    %v309 = vcvt.s32.f32 %v277
    %v310 = vcvt.s32.f32 %v278
    %v311 = vcvt.s32.f32 %v279
    %v312 = vcvt.s32.f32 %v280
    %v313 = vcvt.s32.f32 %v281
    %v314 = vcvt.s32.f32 %v282
    %v315 = vcvt.s32.f32 %v283
    %v316 = vcvt.s32.f32 %v284
    %v317 = vcvt.s32.f32 %v285
    %v318 = vcvt.s32.f32 %v286
    %v319 = vcvt.s32.f32 %v287
    %v320 = vmax.f32 %v89, 0.0
    %v321 = vmax.f32 %v90, 0.0
    %v322 = vmax.f32 %v91, 0.0
    %v323 = vmax.f32 %v92, 0.0
    %v324 = vmax.f32 %v93, 0.0
    %v325 = vmax.f32 %v94, 0.0
    %v326 = vmax.f32 %v95, 0.0
    %v327 = vmax.f32 %v96, 0.0
    %v328 = vmax.f32 %v97, 0.0
    %v329 = vmax.f32 %v98, 0.0
    %v330 = vmax.f32 %v99, 0.0
    %v331 = vmax.f32 %v100, 0.0
    %v332 = vmax.f32 %v101, 0.0
    %v333 = vmax.f32 %v102, 0.0
    %v334 = vmax.f32 %v103, 0.0
    %v335 = vmax.f32 %v104, 0.0
    %v336 = vmax.f32 %v105, 0.0
    %v337 = vmax.f32 %v106, 0.0
    %v338 = vmax.f32 %v107, 0.0
    %v339 = vmax.f32 %v108, 0.0
    %v340 = vmax.f32 %v109, 0.0
    %v341 = vmax.f32 %v110, 0.0
    %v342 = vmax.f32 %v111, 0.0
    %v343 = vmax.f32 %v112, 0.0
    %v344 = vmax.f32 %v113, 0.0
    %v345 = vmax.f32 %v114, 0.0
    %v346 = vmax.f32 %v115, 0.0
    %v347 = vmax.f32 %v116, 0.0
    %v348 = vmax.f32 %v117, 0.0
    %v349 = vmax.f32 %v118, 0.0
    %v350 = vmax.f32 %v119, 0.0
    %v351 = vmax.f32 %v120, 0.0
    %v352 = vmul.f32 %v89, %v121
    %v353 = vmul.f32 %v90, %v122
    %v354 = vmul.f32 %v91, %v123
    %v355 = vmul.f32 %v92, %v124
    %v356 = vmul.f32 %v93, %v125
    %v357 = vmul.f32 %v94, %v126
    %v358 = vmul.f32 %v95, %v127
    %v359 = vmul.f32 %v96, %v128
    %v360 = vmul.f32 %v97, %v129
    %v361 = vmul.f32 %v98, %v130
    %v362 = vmul.f32 %v99, %v131
    %v363 = vmul.f32 %v100, %v132
    %v364 = vmul.f32 %v101, %v133
    %v365 = vmul.f32 %v102, %v134
    %v366 = vmul.f32 %v103, %v135
    %v367 = vmul.f32 %v104, %v136
    %v368 = vmul.f32 %v105, %v137
    %v369 = vmul.f32 %v106, %v138
    %v370 = vmul.f32 %v107, %v139
    %v371 = vmul.f32 %v108, %v140
    %v372 = vmul.f32 %v109, %v141
    %v373 = vmul.f32 %v110, %v142
    %v374 = vmul.f32 %v111, %v143
    %v375 = vmul.f32 %v112, %v144
    %v376 = vmul.f32 %v113, %v145
    %v377 = vmul.f32 %v114, %v146
    %v378 = vmul.f32 %v115, %v147
    %v379 = vmul.f32 %v116, %v148
    %v380 = vmul.f32 %v117, %v149
    %v381 = vmul.f32 %v118, %v150
    %v382 = vmul.f32 %v119, %v151
    %v383 = vmul.f32 %v120, %v152
    %v384 = vsub.f32 %v320, %v352
    %v385 = vsub.f32 %v321, %v353
    %v386 = vsub.f32 %v322, %v354
    %v387 = vsub.f32 %v323, %v355
    %v388 = vsub.f32 %v324, %v356
    %v389 = vsub.f32 %v325, %v357
    %v390 = vsub.f32 %v326, %v358
    %v391 = vsub.f32 %v327, %v359
    %v392 = vsub.f32 %v328, %v360
    %v393 = vsub.f32 %v329, %v361
    %v394 = vsub.f32 %v330, %v362
    %v395 = vsub.f32 %v331, %v363
    %v396 = vsub.f32 %v332, %v364
    %v397 = vsub.f32 %v333, %v365
    %v398 = vsub.f32 %v334, %v366
    %v399 = vsub.f32 %v335, %v367
    %v400 = vsub.f32 %v336, %v368
    %v401 = vsub.f32 %v337, %v369
    %v402 = vsub.f32 %v338, %v370
    %v403 = vsub.f32 %v339, %v371
    %v404 = vsub.f32 %v340, %v372
    %v405 = vsub.f32 %v341, %v373
    %v406 = vsub.f32 %v342, %v374
    %v407 = vsub.f32 %v343, %v375
    %v408 = vsub.f32 %v344, %v376
    %v409 = vsub.f32 %v345, %v377
    %v410 = vsub.f32 %v346, %v378
    %v411 = vsub.f32 %v347, %v379
    %v412 = vsub.f32 %v348, %v380
    %v413 = vsub.f32 %v349, %v381
    %v414 = vsub.f32 %v350, %v382
    %v415 = vsub.f32 %v351, %v383
    %v416 = vand.u32 2147483647, %v89
    %v417 = vand.u32 2147483647, %v90
    %v418 = vand.u32 2147483647, %v91
    %v419 = vand.u32 2147483647, %v92
    %v420 = vand.u32 2147483647, %v93
    %v421 = vand.u32 2147483647, %v94
    %v422 = vand.u32 2147483647, %v95
    %v423 = vand.u32 2147483647, %v96
    %v424 = vand.u32 2147483647, %v97
    %v425 = vand.u32 2147483647, %v98
    %v426 = vand.u32 2147483647, %v99
    %v427 = vand.u32 2147483647, %v100
    %v428 = vand.u32 2147483647, %v101
    %v429 = vand.u32 2147483647, %v102
    %v430 = vand.u32 2147483647, %v103
    %v431 = vand.u32 2147483647, %v104
    %v432 = vand.u32 2147483647, %v105
    %v433 = vand.u32 2147483647, %v106
    %v434 = vand.u32 2147483647, %v107
    %v435 = vand.u32 2147483647, %v108
    %v436 = vand.u32 2147483647, %v109
    %v437 = vand.u32 2147483647, %v110
    %v438 = vand.u32 2147483647, %v111
    %v439 = vand.u32 2147483647, %v112
    %v440 = vand.u32 2147483647, %v113
    %v441 = vand.u32 2147483647, %v114
    %v442 = vand.u32 2147483647, %v115
    %v443 = vand.u32 2147483647, %v116
    %v444 = vand.u32 2147483647, %v117
    %v445 = vand.u32 2147483647, %v118
    %v446 = vand.u32 2147483647, %v119
    %v447 = vand.u32 2147483647, %v120
    %v448 = vsub.f32 0.0, %v416
    %v449 = vsub.f32 0.0, %v417
    %v450 = vsub.f32 0.0, %v418
    %v451 = vsub.f32 0.0, %v419
    %v452 = vsub.f32 0.0, %v420
    %v453 = vsub.f32 0.0, %v421
    %v454 = vsub.f32 0.0, %v422
    %v455 = vsub.f32 0.0, %v423
    %v456 = vsub.f32 0.0, %v424
    %v457 = vsub.f32 0.0, %v425
    %v458 = vsub.f32 0.0, %v426
    %v459 = vsub.f32 0.0, %v427
    %v460 = vsub.f32 0.0, %v428
    %v461 = vsub.f32 0.0, %v429
    %v462 = vsub.f32 0.0, %v430
    %v463 = vsub.f32 0.0, %v431
    %v464 = vsub.f32 0.0, %v432
    %v465 = vsub.f32 0.0, %v433
    %v466 = vsub.f32 0.0, %v434
    %v467 = vsub.f32 0.0, %v435
    %v468 = vsub.f32 0.0, %v436
    %v469 = vsub.f32 0.0, %v437
    %v470 = vsub.f32 0.0, %v438
    %v471 = vsub.f32 0.0, %v439
    %v472 = vsub.f32 0.0, %v440
    %v473 = vsub.f32 0.0, %v441
    %v474 = vsub.f32 0.0, %v442
    %v475 = vsub.f32 0.0, %v443
    %v476 = vsub.f32 0.0, %v444
    %v477 = vsub.f32 0.0, %v445
    %v478 = vsub.f32 0.0, %v446
    %v479 = vsub.f32 0.0, %v447
    %v480 = vmul.f32 %v448, 1.442695
    %v481 = vpow.pop %v480
    %v482 = vmul.f32 %v449, 1.442695
    %v483 = vpow.pop %v482
    %v484 = vmul.f32 %v450, 1.442695
    %v485 = vpow.pop %v484
    %v486 = vmul.f32 %v451, 1.442695
    %v487 = vpow.pop %v486
    %v488 = vmul.f32 %v452, 1.442695
    %v489 = vpow.pop %v488
    %v490 = vmul.f32 %v453, 1.442695
    %v491 = vpow.pop %v490
    %v492 = vmul.f32 %v454, 1.442695
    %v493 = vpow.pop %v492
    %v494 = vmul.f32 %v455, 1.442695
    %v495 = vpow.pop %v494
    %v496 = vmul.f32 %v456, 1.442695
    %v497 = vpow.pop %v496
    %v498 = vmul.f32 %v457, 1.442695
    %v499 = vpow.pop %v498
    %v500 = vmul.f32 %v458, 1.442695
    %v501 = vpow.pop %v500
    %v502 = vmul.f32 %v459, 1.442695
    %v503 = vpow.pop %v502
    %v504 = vmul.f32 %v460, 1.442695
    %v505 = vpow.pop %v504
    %v506 = vmul.f32 %v461, 1.442695
    %v507 = vpow.pop %v506
    %v508 = vmul.f32 %v462, 1.442695
    %v509 = vpow.pop %v508
    %v510 = vmul.f32 %v463, 1.442695
    %v511 = vpow.pop %v510
    %v512 = vmul.f32 %v464, 1.442695
    %v513 = vpow.pop %v512
    %v514 = vmul.f32 %v465, 1.442695
    %v515 = vpow.pop %v514
    %v516 = vmul.f32 %v466, 1.442695
    %v517 = vpow.pop %v516
    %v518 = vmul.f32 %v467, 1.442695
    %v519 = vpow.pop %v518
    %v520 = vmul.f32 %v468, 1.442695
    %v521 = vpow.pop %v520
    %v522 = vmul.f32 %v469, 1.442695
    %v523 = vpow.pop %v522
    %v524 = vmul.f32 %v470, 1.442695
    %v525 = vpow.pop %v524
    %v526 = vmul.f32 %v471, 1.442695
    %v527 = vpow.pop %v526
    %v528 = vmul.f32 %v472, 1.442695
    %v529 = vpow.pop %v528
    %v530 = vmul.f32 %v473, 1.442695
    %v531 = vpow.pop %v530
    %v532 = vmul.f32 %v474, 1.442695
    %v533 = vpow.pop %v532
    %v534 = vmul.f32 %v475, 1.442695
    %v535 = vpow.pop %v534
    %v536 = vmul.f32 %v476, 1.442695
    %v537 = vpow.pop %v536
    %v538 = vmul.f32 %v477, 1.442695
    %v539 = vpow.pop %v538
    %v540 = vmul.f32 %v478, 1.442695
    %v541 = vpow.pop %v540
    %v542 = vmul.f32 %v479, 1.442695
    %v543 = vpow.pop %v542
    %v544 = vadd.f32 %v481, 1.0
    %v545 = vlog2.pop %v544
    %v546 = vmul.f32 %v545, 0.6931472
    %v547 = vmul.f32 -0.5, %v481
    %v548 = vadd.f32 %v547, 1.0
    %v549 = vmul.f32 %v548, %v481
    %v550 = vand.u32 2147483647, %v481
    %vm551 = vcmp.lt.f32.partialorder %v550, 0.0004427343
    %v552 = vsel %vm551, %v549, %v546
    %v553 = vadd.f32 %v483, 1.0
    %v554 = vlog2.pop %v553
    %v555 = vmul.f32 %v554, 0.6931472
    %v556 = vmul.f32 -0.5, %v483
    %v557 = vadd.f32 %v556, 1.0
    %v558 = vmul.f32 %v557, %v483
    %v559 = vand.u32 2147483647, %v483
    %vm560 = vcmp.lt.f32.partialorder %v559, 0.0004427343
    %v561 = vsel %vm560, %v558, %v555
    %v562 = vadd.f32 %v485, 1.0
    %v563 = vlog2.pop %v562
    %v564 = vmul.f32 %v563, 0.6931472
    %v565 = vmul.f32 -0.5, %v485
    %v566 = vadd.f32 %v565, 1.0
    %v567 = vmul.f32 %v566, %v485
    %v568 = vand.u32 2147483647, %v485
    %vm569 = vcmp.lt.f32.partialorder %v568, 0.0004427343
    %v570 = vsel %vm569, %v567, %v564
    %v571 = vadd.f32 %v487, 1.0
    %v572 = vlog2.pop %v571
    %v573 = vmul.f32 %v572, 0.6931472
    %v574 = vmul.f32 -0.5, %v487
    %v575 = vadd.f32 %v574, 1.0
    %v576 = vmul.f32 %v575, %v487
    %v577 = vand.u32 2147483647, %v487
    %vm578 = vcmp.lt.f32.partialorder %v577, 0.0004427343
    %v579 = vsel %vm578, %v576, %v573
    %v580 = vadd.f32 %v489, 1.0
    %v581 = vlog2.pop %v580
    %v582 = vmul.f32 %v581, 0.6931472
    %v583 = vmul.f32 -0.5, %v489
    %v584 = vadd.f32 %v583, 1.0
    %v585 = vmul.f32 %v584, %v489
    %v586 = vand.u32 2147483647, %v489
    %vm587 = vcmp.lt.f32.partialorder %v586, 0.0004427343
    %v588 = vsel %vm587, %v585, %v582
    %v589 = vadd.f32 %v491, 1.0
    %v590 = vlog2.pop %v589
    %v591 = vmul.f32 %v590, 0.6931472
    %v592 = vmul.f32 -0.5, %v491
    %v593 = vadd.f32 %v592, 1.0
    %v594 = vmul.f32 %v593, %v491
    %v595 = vand.u32 2147483647, %v491
    %vm596 = vcmp.lt.f32.partialorder %v595, 0.0004427343
    %v597 = vsel %vm596, %v594, %v591
    %v598 = vadd.f32 %v493, 1.0
    %v599 = vlog2.pop %v598
    %v600 = vmul.f32 %v599, 0.6931472
    %v601 = vmul.f32 -0.5, %v493
    %v602 = vadd.f32 %v601, 1.0
    %v603 = vmul.f32 %v602, %v493
    %v604 = vand.u32 2147483647, %v493
    %vm605 = vcmp.lt.f32.partialorder %v604, 0.0004427343
    %v606 = vsel %vm605, %v603, %v600
    %v607 = vadd.f32 %v495, 1.0
    %v608 = vlog2.pop %v607
    %v609 = vmul.f32 %v608, 0.6931472
    %v610 = vmul.f32 -0.5, %v495
    %v611 = vadd.f32 %v610, 1.0
    %v612 = vmul.f32 %v611, %v495
    %v613 = vand.u32 2147483647, %v495
    %vm614 = vcmp.lt.f32.partialorder %v613, 0.0004427343
    %v615 = vsel %vm614, %v612, %v609
    %v616 = vadd.f32 %v497, 1.0
    %v617 = vlog2.pop %v616
    %v618 = vmul.f32 %v617, 0.6931472
    %v619 = vmul.f32 -0.5, %v497
    %v620 = vadd.f32 %v619, 1.0
    %v621 = vmul.f32 %v620, %v497
    %v622 = vand.u32 2147483647, %v497
    %vm623 = vcmp.lt.f32.partialorder %v622, 0.0004427343
    %v624 = vsel %vm623, %v621, %v618
    %v625 = vadd.f32 %v499, 1.0
    %v626 = vlog2.pop %v625
    %v627 = vmul.f32 %v626, 0.6931472
    %v628 = vmul.f32 -0.5, %v499
    %v629 = vadd.f32 %v628, 1.0
    %v630 = vmul.f32 %v629, %v499
    %v631 = vand.u32 2147483647, %v499
    %vm632 = vcmp.lt.f32.partialorder %v631, 0.0004427343
    %v633 = vsel %vm632, %v630, %v627
    %v634 = vadd.f32 %v501, 1.0
    %v635 = vlog2.pop %v634
    %v636 = vmul.f32 %v635, 0.6931472
    %v637 = vmul.f32 -0.5, %v501
    %v638 = vadd.f32 %v637, 1.0
    %v639 = vmul.f32 %v638, %v501
    %v640 = vand.u32 2147483647, %v501
    %vm641 = vcmp.lt.f32.partialorder %v640, 0.0004427343
    %v642 = vsel %vm641, %v639, %v636
    %v643 = vadd.f32 %v503, 1.0
    %v644 = vlog2.pop %v643
    %v645 = vmul.f32 %v644, 0.6931472
    %v646 = vmul.f32 -0.5, %v503
    %v647 = vadd.f32 %v646, 1.0
    %v648 = vmul.f32 %v647, %v503
    %v649 = vand.u32 2147483647, %v503
    %vm650 = vcmp.lt.f32.partialorder %v649, 0.0004427343
    %v651 = vsel %vm650, %v648, %v645
    %v652 = vadd.f32 %v505, 1.0
    %v653 = vlog2.pop %v652
    %v654 = vmul.f32 %v653, 0.6931472
    %v655 = vmul.f32 -0.5, %v505
    %v656 = vadd.f32 %v655, 1.0
    %v657 = vmul.f32 %v656, %v505
    %v658 = vand.u32 2147483647, %v505
    %vm659 = vcmp.lt.f32.partialorder %v658, 0.0004427343
    %v660 = vsel %vm659, %v657, %v654
    %v661 = vadd.f32 %v507, 1.0
    %v662 = vlog2.pop %v661
    %v663 = vmul.f32 %v662, 0.6931472
    %v664 = vmul.f32 -0.5, %v507
    %v665 = vadd.f32 %v664, 1.0
    %v666 = vmul.f32 %v665, %v507
    %v667 = vand.u32 2147483647, %v507
    %vm668 = vcmp.lt.f32.partialorder %v667, 0.0004427343
    %v669 = vsel %vm668, %v666, %v663
    %v670 = vadd.f32 %v509, 1.0
    %v671 = vlog2.pop %v670
    %v672 = vmul.f32 %v671, 0.6931472
    %v673 = vmul.f32 -0.5, %v509
    %v674 = vadd.f32 %v673, 1.0
    %v675 = vmul.f32 %v674, %v509
    %v676 = vand.u32 2147483647, %v509
    %vm677 = vcmp.lt.f32.partialorder %v676, 0.0004427343
    %v678 = vsel %vm677, %v675, %v672
    %v679 = vadd.f32 %v511, 1.0
    %v680 = vlog2.pop %v679
    %v681 = vmul.f32 %v680, 0.6931472
    %v682 = vmul.f32 -0.5, %v511
    %v683 = vadd.f32 %v682, 1.0
    %v684 = vmul.f32 %v683, %v511
    %v685 = vand.u32 2147483647, %v511
    %vm686 = vcmp.lt.f32.partialorder %v685, 0.0004427343
    %v687 = vsel %vm686, %v684, %v681
    %v688 = vadd.f32 %v513, 1.0
    %v689 = vlog2.pop %v688
    %v690 = vmul.f32 %v689, 0.6931472
    %v691 = vmul.f32 -0.5, %v513
    %v692 = vadd.f32 %v691, 1.0
    %v693 = vmul.f32 %v692, %v513
    %v694 = vand.u32 2147483647, %v513
    %vm695 = vcmp.lt.f32.partialorder %v694, 0.0004427343
    %v696 = vsel %vm695, %v693, %v690
    %v697 = vadd.f32 %v515, 1.0
    %v698 = vlog2.pop %v697
    %v699 = vmul.f32 %v698, 0.6931472
    %v700 = vmul.f32 -0.5, %v515
    %v701 = vadd.f32 %v700, 1.0
    %v702 = vmul.f32 %v701, %v515
    %v703 = vand.u32 2147483647, %v515
    %vm704 = vcmp.lt.f32.partialorder %v703, 0.0004427343
    %v705 = vsel %vm704, %v702, %v699
    %v706 = vadd.f32 %v517, 1.0
    %v707 = vlog2.pop %v706
    %v708 = vmul.f32 %v707, 0.6931472
    %v709 = vmul.f32 -0.5, %v517
    %v710 = vadd.f32 %v709, 1.0
    %v711 = vmul.f32 %v710, %v517
    %v712 = vand.u32 2147483647, %v517
    %vm713 = vcmp.lt.f32.partialorder %v712, 0.0004427343
    %v714 = vsel %vm713, %v711, %v708
    %v715 = vadd.f32 %v519, 1.0
    %v716 = vlog2.pop %v715
    %v717 = vmul.f32 %v716, 0.6931472
    %v718 = vmul.f32 -0.5, %v519
    %v719 = vadd.f32 %v718, 1.0
    %v720 = vmul.f32 %v719, %v519
    %v721 = vand.u32 2147483647, %v519
    %vm722 = vcmp.lt.f32.partialorder %v721, 0.0004427343
    %v723 = vsel %vm722, %v720, %v717
    %v724 = vadd.f32 %v521, 1.0
    %v725 = vlog2.pop %v724
    %v726 = vmul.f32 %v725, 0.6931472
    %v727 = vmul.f32 -0.5, %v521
    %v728 = vadd.f32 %v727, 1.0
    %v729 = vmul.f32 %v728, %v521
    %v730 = vand.u32 2147483647, %v521
    %vm731 = vcmp.lt.f32.partialorder %v730, 0.0004427343
    %v732 = vsel %vm731, %v729, %v726
    %v733 = vadd.f32 %v523, 1.0
    %v734 = vlog2.pop %v733
    %v735 = vmul.f32 %v734, 0.6931472
    %v736 = vmul.f32 -0.5, %v523
    %v737 = vadd.f32 %v736, 1.0
    %v738 = vmul.f32 %v737, %v523
    %v739 = vand.u32 2147483647, %v523
    %vm740 = vcmp.lt.f32.partialorder %v739, 0.0004427343
    %v741 = vsel %vm740, %v738, %v735
    %v742 = vadd.f32 %v525, 1.0
    %v743 = vlog2.pop %v742
    %v744 = vmul.f32 %v743, 0.6931472
    %v745 = vmul.f32 -0.5, %v525
    %v746 = vadd.f32 %v745, 1.0
    %v747 = vmul.f32 %v746, %v525
    %v748 = vand.u32 2147483647, %v525
    %vm749 = vcmp.lt.f32.partialorder %v748, 0.0004427343
    %v750 = vsel %vm749, %v747, %v744
    %v751 = vadd.f32 %v527, 1.0
    %v752 = vlog2.pop %v751
    %v753 = vmul.f32 %v752, 0.6931472
    %v754 = vmul.f32 -0.5, %v527
    %v755 = vadd.f32 %v754, 1.0
    %v756 = vmul.f32 %v755, %v527
    %v757 = vand.u32 2147483647, %v527
    %vm758 = vcmp.lt.f32.partialorder %v757, 0.0004427343
    %v759 = vsel %vm758, %v756, %v753
    %v760 = vadd.f32 %v529, 1.0
    %v761 = vlog2.pop %v760
    %v762 = vmul.f32 %v761, 0.6931472
    %v763 = vmul.f32 -0.5, %v529
    %v764 = vadd.f32 %v763, 1.0
    %v765 = vmul.f32 %v764, %v529
    %v766 = vand.u32 2147483647, %v529
    %vm767 = vcmp.lt.f32.partialorder %v766, 0.0004427343
    %v768 = vsel %vm767, %v765, %v762
    %v769 = vadd.f32 %v531, 1.0
    %v770 = vlog2.pop %v769
    %v771 = vmul.f32 %v770, 0.6931472
    %v772 = vmul.f32 -0.5, %v531
    %v773 = vadd.f32 %v772, 1.0
    %v774 = vmul.f32 %v773, %v531
    %v775 = vand.u32 2147483647, %v531
    %vm776 = vcmp.lt.f32.partialorder %v775, 0.0004427343
    %v777 = vsel %vm776, %v774, %v771
    %v778 = vadd.f32 %v533, 1.0
    %v779 = vlog2.pop %v778
    %v780 = vmul.f32 %v779, 0.6931472
    %v781 = vmul.f32 -0.5, %v533
    %v782 = vadd.f32 %v781, 1.0
    %v783 = vmul.f32 %v782, %v533
    %v784 = vand.u32 2147483647, %v533
    %vm785 = vcmp.lt.f32.partialorder %v784, 0.0004427343
    %v786 = vsel %vm785, %v783, %v780
    %v787 = vadd.f32 %v535, 1.0
    %v788 = vlog2.pop %v787
    %v789 = vmul.f32 %v788, 0.6931472
    %v790 = vmul.f32 -0.5, %v535
    %v791 = vadd.f32 %v790, 1.0
    %v792 = vmul.f32 %v791, %v535
    %v793 = vand.u32 2147483647, %v535
    %vm794 = vcmp.lt.f32.partialorder %v793, 0.0004427343
    %v795 = vsel %vm794, %v792, %v789
    %v796 = vadd.f32 %v537, 1.0
    %v797 = vlog2.pop %v796
    %v798 = vmul.f32 %v797, 0.6931472
    %v799 = vmul.f32 -0.5, %v537
    %v800 = vadd.f32 %v799, 1.0
    %v801 = vmul.f32 %v800, %v537
    %v802 = vand.u32 2147483647, %v537
    %vm803 = vcmp.lt.f32.partialorder %v802, 0.0004427343
    %v804 = vsel %vm803, %v801, %v798
    %v805 = vadd.f32 %v539, 1.0
    %v806 = vlog2.pop %v805
    %v807 = vmul.f32 %v806, 0.6931472
    %v808 = vmul.f32 -0.5, %v539
    %v809 = vadd.f32 %v808, 1.0
    %v810 = vmul.f32 %v809, %v539
    %v811 = vand.u32 2147483647, %v539
    %vm812 = vcmp.lt.f32.partialorder %v811, 0.0004427343
    %v813 = vsel %vm812, %v810, %v807
    %v814 = vadd.f32 %v541, 1.0
    %v815 = vlog2.pop %v814
    %v816 = vmul.f32 %v815, 0.6931472
    %v817 = vmul.f32 -0.5, %v541
    %v818 = vadd.f32 %v817, 1.0
    %v819 = vmul.f32 %v818, %v541
    %v820 = vand.u32 2147483647, %v541
    %vm821 = vcmp.lt.f32.partialorder %v820, 0.0004427343
    %v822 = vsel %vm821, %v819, %v816
    %v823 = vadd.f32 %v543, 1.0
    %v824 = vlog2.pop %v823
    %v825 = vmul.f32 %v824, 0.6931472
    %v826 = vmul.f32 -0.5, %v543
    %v827 = vadd.f32 %v826, 1.0
    %v828 = vmul.f32 %v827, %v543
    %v829 = vand.u32 2147483647, %v543
    %vm830 = vcmp.lt.f32.partialorder %v829, 0.0004427343
    %v831 = vsel %vm830, %v828, %v825
    %v832 = vadd.f32 %v384, %v552
    %v833 = vadd.f32 %v385, %v561
    %v834 = vadd.f32 %v386, %v570
    %v835 = vadd.f32 %v387, %v579
    %v836 = vadd.f32 %v388, %v588
    %v837 = vadd.f32 %v389, %v597
    %v838 = vadd.f32 %v390, %v606
    %v839 = vadd.f32 %v391, %v615
    %v840 = vadd.f32 %v392, %v624
    %v841 = vadd.f32 %v393, %v633
    %v842 = vadd.f32 %v394, %v642
    %v843 = vadd.f32 %v395, %v651
    %v844 = vadd.f32 %v396, %v660
    %v845 = vadd.f32 %v397, %v669
    %v846 = vadd.f32 %v398, %v678
    %v847 = vadd.f32 %v399, %v687
    %v848 = vadd.f32 %v400, %v696
    %v849 = vadd.f32 %v401, %v705
    %v850 = vadd.f32 %v402, %v714
    %v851 = vadd.f32 %v403, %v723
    %v852 = vadd.f32 %v404, %v732
    %v853 = vadd.f32 %v405, %v741
    %v854 = vadd.f32 %v406, %v750
    %v855 = vadd.f32 %v407, %v759
    %v856 = vadd.f32 %v408, %v768
    %v857 = vadd.f32 %v409, %v777
    %v858 = vadd.f32 %v410, %v786
    %v859 = vadd.f32 %v411, %v795
    %v860 = vadd.f32 %v412, %v804
    %v861 = vadd.f32 %v413, %v813
    %v862 = vadd.f32 %v414, %v822
    %v863 = vadd.f32 %v415, %v831
    %v864 = vsel %vm217, %v832, 0.0
    %v865 = vsel %vm218, %v833, 0.0
    %v866 = vsel %vm219, %v834, 0.0
    %v867 = vsel %vm220, %v835, 0.0
    %v868 = vsel %vm221, %v836, 0.0
    %v869 = vsel %vm222, %v837, 0.0
    %v870 = vsel %vm223, %v838, 0.0
    %v871 = vsel %vm224, %v839, 0.0
    %v872 = vsel %vm225, %v840, 0.0
    %v873 = vsel %vm226, %v841, 0.0
    %v874 = vsel %vm227, %v842, 0.0
    %v875 = vsel %vm228, %v843, 0.0
    %v876 = vsel %vm229, %v844, 0.0
    %v877 = vsel %vm230, %v845, 0.0
    %v878 = vsel %vm231, %v846, 0.0
    %v879 = vsel %vm232, %v847, 0.0
    %v880 = vsel %vm233, %v848, 0.0
    %v881 = vsel %vm234, %v849, 0.0
    %v882 = vsel %vm235, %v850, 0.0
    %v883 = vsel %vm236, %v851, 0.0
    %v884 = vsel %vm237, %v852, 0.0
    %v885 = vsel %vm238, %v853, 0.0
    %v886 = vsel %vm239, %v854, 0.0
    %v887 = vsel %vm240, %v855, 0.0
    %v888 = vsel %vm241, %v856, 0.0
    %v889 = vsel %vm242, %v857, 0.0
    %v890 = vsel %vm243, %v858, 0.0
    %v891 = vsel %vm244, %v859, 0.0
    %v892 = vsel %vm245, %v860, 0.0
    %v893 = vsel %vm246, %v861, 0.0
    %v894 = vsel %vm247, %v862, 0.0
    %v895 = vsel %vm248, %v863, 0.0
    %v896 = vld [vmem:[%s2] sm:$0xff]
    %v897 = vld [vmem:[%s2 + $0x8] sm:$0xff]
    %v898 = vld [vmem:[%s2 + $0x10] sm:$0xff]
    %v899 = vld [vmem:[%s2 + $0x18] sm:$0xff]
    %932 = vst [vmem:[#allocation1] ss:$9 sm:$0xff] %v864
    %s933 = scalar_lea.vmem [#allocation1], 1
    %934 = vst [vmem:[%s933] ss:$9 sm:$0xff] %v865
    %s935 = scalar_lea.vmem [#allocation1], 2
    %936 = vst [vmem:[%s935] ss:$9 sm:$0xff] %v866
    %s937 = scalar_lea.vmem [#allocation1], 3
    %938 = vst [vmem:[%s937] ss:$9 sm:$0xff] %v867
    %s939 = scalar_lea.vmem [#allocation1], 4
    %940 = vst [vmem:[%s939] ss:$9 sm:$0xff] %v868
    %s941 = scalar_lea.vmem [#allocation1], 5
    %942 = vst [vmem:[%s941] ss:$9 sm:$0xff] %v869
    %s943 = scalar_lea.vmem [#allocation1], 6
    %944 = vst [vmem:[%s943] ss:$9 sm:$0xff] %v870
    %s945 = scalar_lea.vmem [#allocation1], 7
    %946 = vst [vmem:[%s945] ss:$9 sm:$0xff] %v871
    %v947 = vld [vmem:[#allocation1] sm:$0xff]
    %v948 = vld [vmem:[#allocation1 + $0x9] sm:$0xff]
    %v949 = vld [vmem:[#allocation1 + $0x12] sm:$0xff]
    %v950 = vld [vmem:[#allocation1 + $0x1b] sm:$0xff]
    %951 = vst [vmem:[#allocation1] ss:$9 sm:$0xff] %v872
    %952 = vst [vmem:[%s933] ss:$9 sm:$0xff] %v873
    %953 = vst [vmem:[%s935] ss:$9 sm:$0xff] %v874
    %954 = vst [vmem:[%s937] ss:$9 sm:$0xff] %v875
    %955 = vst [vmem:[%s939] ss:$9 sm:$0xff] %v876
    %956 = vst [vmem:[%s941] ss:$9 sm:$0xff] %v877
    %957 = vst [vmem:[%s943] ss:$9 sm:$0xff] %v878
    %958 = vst [vmem:[%s945] ss:$9 sm:$0xff] %v879
    %v959 = vld [vmem:[#allocation1] sm:$0xff]
    %v960 = vld [vmem:[#allocation1 + $0x9] sm:$0xff]
    %v961 = vld [vmem:[#allocation1 + $0x12] sm:$0xff]
    %v962 = vld [vmem:[#allocation1 + $0x1b] sm:$0xff]
    %963 = vst [vmem:[#allocation1] ss:$9 sm:$0xff] %v880
    %964 = vst [vmem:[%s933] ss:$9 sm:$0xff] %v881
    %965 = vst [vmem:[%s935] ss:$9 sm:$0xff] %v882
    %966 = vst [vmem:[%s937] ss:$9 sm:$0xff] %v883
    %967 = vst [vmem:[%s939] ss:$9 sm:$0xff] %v884
    %968 = vst [vmem:[%s941] ss:$9 sm:$0xff] %v885
    %969 = vst [vmem:[%s943] ss:$9 sm:$0xff] %v886
    %970 = vst [vmem:[%s945] ss:$9 sm:$0xff] %v887
    %v971 = vld [vmem:[#allocation1] sm:$0xff]
    %v972 = vld [vmem:[#allocation1 + $0x9] sm:$0xff]
    %v973 = vld [vmem:[#allocation1 + $0x12] sm:$0xff]
    %v974 = vld [vmem:[#allocation1 + $0x1b] sm:$0xff]
    %975 = vst [vmem:[#allocation1] ss:$9 sm:$0xff] %v888
    %976 = vst [vmem:[%s933] ss:$9 sm:$0xff] %v889
    %977 = vst [vmem:[%s935] ss:$9 sm:$0xff] %v890
    %978 = vst [vmem:[%s937] ss:$9 sm:$0xff] %v891
    %979 = vst [vmem:[%s939] ss:$9 sm:$0xff] %v892
    %980 = vst [vmem:[%s941] ss:$9 sm:$0xff] %v893
    %981 = vst [vmem:[%s943] ss:$9 sm:$0xff] %v894
    %982 = vst [vmem:[%s945] ss:$9 sm:$0xff] %v895
    %v983 = vld [vmem:[#allocation1] sm:$0xff]
    %v984 = vld [vmem:[#allocation1 + $0x9] sm:$0xff]
    %v985 = vld [vmem:[#allocation1 + $0x12] sm:$0xff]
    %v986 = vld [vmem:[#allocation1 + $0x1b] sm:$0xff]
    %v1003 = vadd.f32 %v947, %v959
    %v1004 = vadd.f32 %v1003, %v971
    %v1005 = vadd.f32 %v1004, %v983
    %v1006 = vadd.f32 %v948, %v960
    %v1007 = vadd.f32 %v1006, %v972
    %v1008 = vadd.f32 %v1007, %v984
    %v1009 = vadd.f32 %v949, %v961
    %v1010 = vadd.f32 %v1009, %v973
    %v1011 = vadd.f32 %v1010, %v985
    %v1012 = vadd.f32 %v950, %v962
    %v1013 = vadd.f32 %v1012, %v974
    %v1014 = vadd.f32 %v1013, %v986
    %v1015 = vadd.f32 %v896, %v1005
    %v1016 = vadd.f32 %v897, %v1008
    %v1017 = vadd.f32 %v898, %v1011
    %v1018 = vadd.f32 %v899, %v1014
    %1019 = vst [vmem:[%s2] sm:$0xff] %v1015
    %1020 = vst [vmem:[%s2 + $0x8] sm:$0xff] %v1016
    %1021 = vst [vmem:[%s2 + $0x10] sm:$0xff] %v1017
    %1022 = vst [vmem:[%s2 + $0x18] sm:$0xff] %v1018
    %v1023 = vld [vmem:[%s3] sm:$0xff]
    %v1024 = vld [vmem:[%s3 + $0x8] sm:$0xff]
    %v1025 = vld [vmem:[%s3 + $0x10] sm:$0xff]
    %v1026 = vld [vmem:[%s3 + $0x18] sm:$0xff]
    %1059 = vst [vmem:[#allocation1] ss:$9 sm:$0xff] %v288
    %s1060 = scalar_lea.vmem [#allocation1], 1
    %1061 = vst [vmem:[%s1060] ss:$9 sm:$0xff] %v289
    %s1062 = scalar_lea.vmem [#allocation1], 2
    %1063 = vst [vmem:[%s1062] ss:$9 sm:$0xff] %v290
    %s1064 = scalar_lea.vmem [#allocation1], 3
    %1065 = vst [vmem:[%s1064] ss:$9 sm:$0xff] %v291
    %s1066 = scalar_lea.vmem [#allocation1], 4
    %1067 = vst [vmem:[%s1066] ss:$9 sm:$0xff] %v292
    %s1068 = scalar_lea.vmem [#allocation1], 5
    %1069 = vst [vmem:[%s1068] ss:$9 sm:$0xff] %v293
    %s1070 = scalar_lea.vmem [#allocation1], 6
    %1071 = vst [vmem:[%s1070] ss:$9 sm:$0xff] %v294
    %s1072 = scalar_lea.vmem [#allocation1], 7
    %1073 = vst [vmem:[%s1072] ss:$9 sm:$0xff] %v295
    %v1074 = vld [vmem:[#allocation1] sm:$0xff]
    %v1075 = vld [vmem:[#allocation1 + $0x9] sm:$0xff]
    %v1076 = vld [vmem:[#allocation1 + $0x12] sm:$0xff]
    %v1077 = vld [vmem:[#allocation1 + $0x1b] sm:$0xff]
    %1078 = vst [vmem:[#allocation1] ss:$9 sm:$0xff] %v296
    %1079 = vst [vmem:[%s1060] ss:$9 sm:$0xff] %v297
    %1080 = vst [vmem:[%s1062] ss:$9 sm:$0xff] %v298
    %1081 = vst [vmem:[%s1064] ss:$9 sm:$0xff] %v299
    %1082 = vst [vmem:[%s1066] ss:$9 sm:$0xff] %v300
    %1083 = vst [vmem:[%s1068] ss:$9 sm:$0xff] %v301
    %1084 = vst [vmem:[%s1070] ss:$9 sm:$0xff] %v302
    %1085 = vst [vmem:[%s1072] ss:$9 sm:$0xff] %v303
    %v1086 = vld [vmem:[#allocation1] sm:$0xff]
    %v1087 = vld [vmem:[#allocation1 + $0x9] sm:$0xff]
    %v1088 = vld [vmem:[#allocation1 + $0x12] sm:$0xff]
    %v1089 = vld [vmem:[#allocation1 + $0x1b] sm:$0xff]
    %1090 = vst [vmem:[#allocation1] ss:$9 sm:$0xff] %v304
    %1091 = vst [vmem:[%s1060] ss:$9 sm:$0xff] %v305
    %1092 = vst [vmem:[%s1062] ss:$9 sm:$0xff] %v306
    %1093 = vst [vmem:[%s1064] ss:$9 sm:$0xff] %v307
    %1094 = vst [vmem:[%s1066] ss:$9 sm:$0xff] %v308
    %1095 = vst [vmem:[%s1068] ss:$9 sm:$0xff] %v309
    %1096 = vst [vmem:[%s1070] ss:$9 sm:$0xff] %v310
    %1097 = vst [vmem:[%s1072] ss:$9 sm:$0xff] %v311
    %v1098 = vld [vmem:[#allocation1] sm:$0xff]
    %v1099 = vld [vmem:[#allocation1 + $0x9] sm:$0xff]
    %v1100 = vld [vmem:[#allocation1 + $0x12] sm:$0xff]
    %v1101 = vld [vmem:[#allocation1 + $0x1b] sm:$0xff]
    %1102 = vst [vmem:[#allocation1] ss:$9 sm:$0xff] %v312
    %1103 = vst [vmem:[%s1060] ss:$9 sm:$0xff] %v313
    %1104 = vst [vmem:[%s1062] ss:$9 sm:$0xff] %v314
    %1105 = vst [vmem:[%s1064] ss:$9 sm:$0xff] %v315
    %1106 = vst [vmem:[%s1066] ss:$9 sm:$0xff] %v316
    %1107 = vst [vmem:[%s1068] ss:$9 sm:$0xff] %v317
    %1108 = vst [vmem:[%s1070] ss:$9 sm:$0xff] %v318
    %1109 = vst [vmem:[%s1072] ss:$9 sm:$0xff] %v319
    %v1110 = vld [vmem:[#allocation1] sm:$0xff]
    %v1111 = vld [vmem:[#allocation1 + $0x9] sm:$0xff]
    %v1112 = vld [vmem:[#allocation1 + $0x12] sm:$0xff]
    %v1113 = vld [vmem:[#allocation1 + $0x1b] sm:$0xff]
    %v1130 = vadd.f32 %v1074, %v1086
    %v1131 = vadd.f32 %v1130, %v1098
    %v1132 = vadd.f32 %v1131, %v1110
    %v1133 = vadd.f32 %v1075, %v1087
    %v1134 = vadd.f32 %v1133, %v1099
    %v1135 = vadd.f32 %v1134, %v1111
    %v1136 = vadd.f32 %v1076, %v1088
    %v1137 = vadd.f32 %v1136, %v1100
    %v1138 = vadd.f32 %v1137, %v1112
    %v1139 = vadd.f32 %v1077, %v1089
    %v1140 = vadd.f32 %v1139, %v1101
    %v1141 = vadd.f32 %v1140, %v1113
    %v1142 = vadd.f32 %v1023, %v1132
    %v1143 = vadd.f32 %v1024, %v1135
    %v1144 = vadd.f32 %v1025, %v1138
    %v1145 = vadd.f32 %v1026, %v1141
    %1146 = vst [vmem:[%s3] sm:$0xff] %v1142
    %1147 = vst [vmem:[%s3 + $0x8] sm:$0xff] %v1143
    %1148 = vst [vmem:[%s3 + $0x10] sm:$0xff] %v1144
    %1149 = vst [vmem:[%s3 + $0x18] sm:$0xff] %v1145
  $region17: #{bce_with_logits_loss_2d.1} parent=0 // pred_fallthru
    _
  %p1150 = scmp.gt.s32.totalorder %s251, 1
  // Predicated region
  $region18: #{bce_with_logits_loss_2d.1} parent=0 // pred_check
    %p1151 = pneg %p1150
  $region19: #{bce_with_logits_loss_2d.1} parent=0 // pred_check_branch
    %1153 = sbr.rel (%p1151) target = $region21
  $region20: #{bce_with_logits_loss_2d.1} parent=0 // pred_region
    %s1154 = ssub.s32 1, %s250
    %v1155 = vlaneseq
    %v1156 = vshrl.u32 %v1155, 7
    %v1157 = vadd.s32 %v1156, 8
    %v1158 = vadd.s32 %v1156, 16
    %v1159 = vadd.s32 %v1156, 24
    %v1160 = vstv %s1154
    %vm1161 = vcmp.lt.s32.totalorder %v1156, %v1160
    %vm1162 = vcmp.lt.s32.totalorder %v1157, %v1160
    %vm1163 = vcmp.lt.s32.totalorder %v1158, %v1160
    %vm1164 = vcmp.lt.s32.totalorder %v1159, %v1160
    %v1165 = vsel %vm1161, 1, 0
    %v1166 = vsel %vm1162, 1, 0
    %v1167 = vsel %vm1163, 1, 0
    %v1168 = vsel %vm1164, 1, 0
    %v1169 = vperm.slane %v1165, 0
    %v1170 = vperm.slane %v1165, 1
    %v1171 = vperm.slane %v1165, 2
    %v1172 = vperm.slane %v1165, 3
    %v1173 = vperm.slane %v1165, 4
    %v1174 = vperm.slane %v1165, 5
    %v1175 = vperm.slane %v1165, 6
    %v1176 = vperm.slane %v1165, 7
    %v1177 = vperm.slane %v1166, 0
    %v1178 = vperm.slane %v1166, 1
    %v1179 = vperm.slane %v1166, 2
    %v1180 = vperm.slane %v1166, 3
    %v1181 = vperm.slane %v1166, 4
    %v1182 = vperm.slane %v1166, 5
    %v1183 = vperm.slane %v1166, 6
    %v1184 = vperm.slane %v1166, 7
    %v1185 = vperm.slane %v1167, 0
    %v1186 = vperm.slane %v1167, 1
    %v1187 = vperm.slane %v1167, 2
    %v1188 = vperm.slane %v1167, 3
    %v1189 = vperm.slane %v1167, 4
    %v1190 = vperm.slane %v1167, 5
    %v1191 = vperm.slane %v1167, 6
    %v1192 = vperm.slane %v1167, 7
    %v1193 = vperm.slane %v1168, 0
    %v1194 = vperm.slane %v1168, 1
    %v1195 = vperm.slane %v1168, 2
    %v1196 = vperm.slane %v1168, 3
    %v1197 = vperm.slane %v1168, 4
    %v1198 = vperm.slane %v1168, 5
    %v1199 = vperm.slane %v1168, 6
    %v1200 = vperm.slane %v1168, 7
    %vm1201 = vcmp.ne.s32.totalorder %v1169, 0
    %vm1202 = vcmp.ne.s32.totalorder %v1170, 0
    %vm1203 = vcmp.ne.s32.totalorder %v1171, 0
    %vm1204 = vcmp.ne.s32.totalorder %v1172, 0
    %vm1205 = vcmp.ne.s32.totalorder %v1173, 0
    %vm1206 = vcmp.ne.s32.totalorder %v1174, 0
    %vm1207 = vcmp.ne.s32.totalorder %v1175, 0
    %vm1208 = vcmp.ne.s32.totalorder %v1176, 0
    %vm1209 = vcmp.ne.s32.totalorder %v1177, 0
    %vm1210 = vcmp.ne.s32.totalorder %v1178, 0
    %vm1211 = vcmp.ne.s32.totalorder %v1179, 0
    %vm1212 = vcmp.ne.s32.totalorder %v1180, 0
    %vm1213 = vcmp.ne.s32.totalorder %v1181, 0
    %vm1214 = vcmp.ne.s32.totalorder %v1182, 0
    %vm1215 = vcmp.ne.s32.totalorder %v1183, 0
    %vm1216 = vcmp.ne.s32.totalorder %v1184, 0
    %vm1217 = vcmp.ne.s32.totalorder %v1185, 0
    %vm1218 = vcmp.ne.s32.totalorder %v1186, 0
    %vm1219 = vcmp.ne.s32.totalorder %v1187, 0
    %vm1220 = vcmp.ne.s32.totalorder %v1188, 0
    %vm1221 = vcmp.ne.s32.totalorder %v1189, 0
    %vm1222 = vcmp.ne.s32.totalorder %v1190, 0
    %vm1223 = vcmp.ne.s32.totalorder %v1191, 0
    %vm1224 = vcmp.ne.s32.totalorder %v1192, 0
    %vm1225 = vcmp.ne.s32.totalorder %v1193, 0
    %vm1226 = vcmp.ne.s32.totalorder %v1194, 0
    %vm1227 = vcmp.ne.s32.totalorder %v1195, 0
    %vm1228 = vcmp.ne.s32.totalorder %v1196, 0
    %vm1229 = vcmp.ne.s32.totalorder %v1197, 0
    %vm1230 = vcmp.ne.s32.totalorder %v1198, 0
    %vm1231 = vcmp.ne.s32.totalorder %v1199, 0
    %vm1232 = vcmp.ne.s32.totalorder %v1200, 0
    %vm1233 = vmand %vm217, %vm1201
    %vm1234 = vmand %vm218, %vm1202
    %vm1235 = vmand %vm219, %vm1203
    %vm1236 = vmand %vm220, %vm1204
    %vm1237 = vmand %vm221, %vm1205
    %vm1238 = vmand %vm222, %vm1206
    %vm1239 = vmand %vm223, %vm1207
    %vm1240 = vmand %vm224, %vm1208
    %vm1241 = vmand %vm225, %vm1209
    %vm1242 = vmand %vm226, %vm1210
    %vm1243 = vmand %vm227, %vm1211
    %vm1244 = vmand %vm228, %vm1212
    %vm1245 = vmand %vm229, %vm1213
    %vm1246 = vmand %vm230, %vm1214
    %vm1247 = vmand %vm231, %vm1215
    %vm1248 = vmand %vm232, %vm1216
    %vm1249 = vmand %vm233, %vm1217
    %vm1250 = vmand %vm234, %vm1218
    %vm1251 = vmand %vm235, %vm1219
    %vm1252 = vmand %vm236, %vm1220
    %vm1253 = vmand %vm237, %vm1221
    %vm1254 = vmand %vm238, %vm1222
    %vm1255 = vmand %vm239, %vm1223
    %vm1256 = vmand %vm240, %vm1224
    %vm1257 = vmand %vm241, %vm1225
    %vm1258 = vmand %vm242, %vm1226
    %vm1259 = vmand %vm243, %vm1227
    %vm1260 = vmand %vm244, %vm1228
    %vm1261 = vmand %vm245, %vm1229
    %vm1262 = vmand %vm246, %vm1230
    %vm1263 = vmand %vm247, %vm1231
    %vm1264 = vmand %vm248, %vm1232
    %v1265 = vsel %vm1233, 1, 0
    %v1266 = vsel %vm1234, 1, 0
    %v1267 = vsel %vm1235, 1, 0
    %v1268 = vsel %vm1236, 1, 0
    %v1269 = vsel %vm1237, 1, 0
    %v1270 = vsel %vm1238, 1, 0
    %v1271 = vsel %vm1239, 1, 0
    %v1272 = vsel %vm1240, 1, 0
    %v1273 = vsel %vm1241, 1, 0
    %v1274 = vsel %vm1242, 1, 0
    %v1275 = vsel %vm1243, 1, 0
    %v1276 = vsel %vm1244, 1, 0
    %v1277 = vsel %vm1245, 1, 0
    %v1278 = vsel %vm1246, 1, 0
    %v1279 = vsel %vm1247, 1, 0
    %v1280 = vsel %vm1248, 1, 0
    %v1281 = vsel %vm1249, 1, 0
    %v1282 = vsel %vm1250, 1, 0
    %v1283 = vsel %vm1251, 1, 0
    %v1284 = vsel %vm1252, 1, 0
    %v1285 = vsel %vm1253, 1, 0
    %v1286 = vsel %vm1254, 1, 0
    %v1287 = vsel %vm1255, 1, 0
    %v1288 = vsel %vm1256, 1, 0
    %v1289 = vsel %vm1257, 1, 0
    %v1290 = vsel %vm1258, 1, 0
    %v1291 = vsel %vm1259, 1, 0
    %v1292 = vsel %vm1260, 1, 0
    %v1293 = vsel %vm1261, 1, 0
    %v1294 = vsel %vm1262, 1, 0
    %v1295 = vsel %vm1263, 1, 0
    %v1296 = vsel %vm1264, 1, 0
    %v1297 = vcvt.s32.f32 %v1265
    %v1298 = vcvt.s32.f32 %v1266
    %v1299 = vcvt.s32.f32 %v1267
    %v1300 = vcvt.s32.f32 %v1268
    %v1301 = vcvt.s32.f32 %v1269
    %v1302 = vcvt.s32.f32 %v1270
    %v1303 = vcvt.s32.f32 %v1271
    %v1304 = vcvt.s32.f32 %v1272
    %v1305 = vcvt.s32.f32 %v1273
    %v1306 = vcvt.s32.f32 %v1274
    %v1307 = vcvt.s32.f32 %v1275
    %v1308 = vcvt.s32.f32 %v1276
    %v1309 = vcvt.s32.f32 %v1277
    %v1310 = vcvt.s32.f32 %v1278
    %v1311 = vcvt.s32.f32 %v1279
    %v1312 = vcvt.s32.f32 %v1280
    %v1313 = vcvt.s32.f32 %v1281
    %v1314 = vcvt.s32.f32 %v1282
    %v1315 = vcvt.s32.f32 %v1283
    %v1316 = vcvt.s32.f32 %v1284
    %v1317 = vcvt.s32.f32 %v1285
    %v1318 = vcvt.s32.f32 %v1286
    %v1319 = vcvt.s32.f32 %v1287
    %v1320 = vcvt.s32.f32 %v1288
    %v1321 = vcvt.s32.f32 %v1289
    %v1322 = vcvt.s32.f32 %v1290
    %v1323 = vcvt.s32.f32 %v1291
    %v1324 = vcvt.s32.f32 %v1292
    %v1325 = vcvt.s32.f32 %v1293
    %v1326 = vcvt.s32.f32 %v1294
    %v1327 = vcvt.s32.f32 %v1295
    %v1328 = vcvt.s32.f32 %v1296
    %v1329 = vmax.f32 %v89, 0.0
    %v1330 = vmax.f32 %v90, 0.0
    %v1331 = vmax.f32 %v91, 0.0
    %v1332 = vmax.f32 %v92, 0.0
    %v1333 = vmax.f32 %v93, 0.0
    %v1334 = vmax.f32 %v94, 0.0
    %v1335 = vmax.f32 %v95, 0.0
    %v1336 = vmax.f32 %v96, 0.0
    %v1337 = vmax.f32 %v97, 0.0
    %v1338 = vmax.f32 %v98, 0.0
    %v1339 = vmax.f32 %v99, 0.0
    %v1340 = vmax.f32 %v100, 0.0
    %v1341 = vmax.f32 %v101, 0.0
    %v1342 = vmax.f32 %v102, 0.0
    %v1343 = vmax.f32 %v103, 0.0
    %v1344 = vmax.f32 %v104, 0.0
    %v1345 = vmax.f32 %v105, 0.0
    %v1346 = vmax.f32 %v106, 0.0
    %v1347 = vmax.f32 %v107, 0.0
    %v1348 = vmax.f32 %v108, 0.0
    %v1349 = vmax.f32 %v109, 0.0
    %v1350 = vmax.f32 %v110, 0.0
    %v1351 = vmax.f32 %v111, 0.0
    %v1352 = vmax.f32 %v112, 0.0
    %v1353 = vmax.f32 %v113, 0.0
    %v1354 = vmax.f32 %v114, 0.0
    %v1355 = vmax.f32 %v115, 0.0
    %v1356 = vmax.f32 %v116, 0.0
    %v1357 = vmax.f32 %v117, 0.0
    %v1358 = vmax.f32 %v118, 0.0
    %v1359 = vmax.f32 %v119, 0.0
    %v1360 = vmax.f32 %v120, 0.0
    %v1361 = vmul.f32 %v89, %v121
    %v1362 = vmul.f32 %v90, %v122
    %v1363 = vmul.f32 %v91, %v123
    %v1364 = vmul.f32 %v92, %v124
    %v1365 = vmul.f32 %v93, %v125
    %v1366 = vmul.f32 %v94, %v126
    %v1367 = vmul.f32 %v95, %v127
    %v1368 = vmul.f32 %v96, %v128
    %v1369 = vmul.f32 %v97, %v129
    %v1370 = vmul.f32 %v98, %v130
    %v1371 = vmul.f32 %v99, %v131
    %v1372 = vmul.f32 %v100, %v132
    %v1373 = vmul.f32 %v101, %v133
    %v1374 = vmul.f32 %v102, %v134
    %v1375 = vmul.f32 %v103, %v135
    %v1376 = vmul.f32 %v104, %v136
    %v1377 = vmul.f32 %v105, %v137
    %v1378 = vmul.f32 %v106, %v138
    %v1379 = vmul.f32 %v107, %v139
    %v1380 = vmul.f32 %v108, %v140
    %v1381 = vmul.f32 %v109, %v141
    %v1382 = vmul.f32 %v110, %v142
    %v1383 = vmul.f32 %v111, %v143
    %v1384 = vmul.f32 %v112, %v144
    %v1385 = vmul.f32 %v113, %v145
    %v1386 = vmul.f32 %v114, %v146
    %v1387 = vmul.f32 %v115, %v147
    %v1388 = vmul.f32 %v116, %v148
    %v1389 = vmul.f32 %v117, %v149
    %v1390 = vmul.f32 %v118, %v150
    %v1391 = vmul.f32 %v119, %v151
    %v1392 = vmul.f32 %v120, %v152
    %v1393 = vsub.f32 %v1329, %v1361
    %v1394 = vsub.f32 %v1330, %v1362
    %v1395 = vsub.f32 %v1331, %v1363
    %v1396 = vsub.f32 %v1332, %v1364
    %v1397 = vsub.f32 %v1333, %v1365
    %v1398 = vsub.f32 %v1334, %v1366
    %v1399 = vsub.f32 %v1335, %v1367
    %v1400 = vsub.f32 %v1336, %v1368
    %v1401 = vsub.f32 %v1337, %v1369
    %v1402 = vsub.f32 %v1338, %v1370
    %v1403 = vsub.f32 %v1339, %v1371
    %v1404 = vsub.f32 %v1340, %v1372
    %v1405 = vsub.f32 %v1341, %v1373
    %v1406 = vsub.f32 %v1342, %v1374
    %v1407 = vsub.f32 %v1343, %v1375
    %v1408 = vsub.f32 %v1344, %v1376
    %v1409 = vsub.f32 %v1345, %v1377
    %v1410 = vsub.f32 %v1346, %v1378
    %v1411 = vsub.f32 %v1347, %v1379
    %v1412 = vsub.f32 %v1348, %v1380
    %v1413 = vsub.f32 %v1349, %v1381
    %v1414 = vsub.f32 %v1350, %v1382
    %v1415 = vsub.f32 %v1351, %v1383
    %v1416 = vsub.f32 %v1352, %v1384
    %v1417 = vsub.f32 %v1353, %v1385
    %v1418 = vsub.f32 %v1354, %v1386
    %v1419 = vsub.f32 %v1355, %v1387
    %v1420 = vsub.f32 %v1356, %v1388
    %v1421 = vsub.f32 %v1357, %v1389
    %v1422 = vsub.f32 %v1358, %v1390
    %v1423 = vsub.f32 %v1359, %v1391
    %v1424 = vsub.f32 %v1360, %v1392
    %v1425 = vand.u32 2147483647, %v89
    %v1426 = vand.u32 2147483647, %v90
    %v1427 = vand.u32 2147483647, %v91
    %v1428 = vand.u32 2147483647, %v92
    %v1429 = vand.u32 2147483647, %v93
    %v1430 = vand.u32 2147483647, %v94
    %v1431 = vand.u32 2147483647, %v95
    %v1432 = vand.u32 2147483647, %v96
    %v1433 = vand.u32 2147483647, %v97
    %v1434 = vand.u32 2147483647, %v98
    %v1435 = vand.u32 2147483647, %v99
    %v1436 = vand.u32 2147483647, %v100
    %v1437 = vand.u32 2147483647, %v101
    %v1438 = vand.u32 2147483647, %v102
    %v1439 = vand.u32 2147483647, %v103
    %v1440 = vand.u32 2147483647, %v104
    %v1441 = vand.u32 2147483647, %v105
    %v1442 = vand.u32 2147483647, %v106
    %v1443 = vand.u32 2147483647, %v107
    %v1444 = vand.u32 2147483647, %v108
    %v1445 = vand.u32 2147483647, %v109
    %v1446 = vand.u32 2147483647, %v110
    %v1447 = vand.u32 2147483647, %v111
    %v1448 = vand.u32 2147483647, %v112
    %v1449 = vand.u32 2147483647, %v113
    %v1450 = vand.u32 2147483647, %v114
    %v1451 = vand.u32 2147483647, %v115
    %v1452 = vand.u32 2147483647, %v116
    %v1453 = vand.u32 2147483647, %v117
    %v1454 = vand.u32 2147483647, %v118
    %v1455 = vand.u32 2147483647, %v119
    %v1456 = vand.u32 2147483647, %v120
    %v1457 = vsub.f32 0.0, %v1425
    %v1458 = vsub.f32 0.0, %v1426
    %v1459 = vsub.f32 0.0, %v1427
    %v1460 = vsub.f32 0.0, %v1428
    %v1461 = vsub.f32 0.0, %v1429
    %v1462 = vsub.f32 0.0, %v1430
    %v1463 = vsub.f32 0.0, %v1431
    %v1464 = vsub.f32 0.0, %v1432
    %v1465 = vsub.f32 0.0, %v1433
    %v1466 = vsub.f32 0.0, %v1434
    %v1467 = vsub.f32 0.0, %v1435
    %v1468 = vsub.f32 0.0, %v1436
    %v1469 = vsub.f32 0.0, %v1437
    %v1470 = vsub.f32 0.0, %v1438
    %v1471 = vsub.f32 0.0, %v1439
    %v1472 = vsub.f32 0.0, %v1440
    %v1473 = vsub.f32 0.0, %v1441
    %v1474 = vsub.f32 0.0, %v1442
    %v1475 = vsub.f32 0.0, %v1443
    %v1476 = vsub.f32 0.0, %v1444
    %v1477 = vsub.f32 0.0, %v1445
    %v1478 = vsub.f32 0.0, %v1446
    %v1479 = vsub.f32 0.0, %v1447
    %v1480 = vsub.f32 0.0, %v1448
    %v1481 = vsub.f32 0.0, %v1449
    %v1482 = vsub.f32 0.0, %v1450
    %v1483 = vsub.f32 0.0, %v1451
    %v1484 = vsub.f32 0.0, %v1452
    %v1485 = vsub.f32 0.0, %v1453
    %v1486 = vsub.f32 0.0, %v1454
    %v1487 = vsub.f32 0.0, %v1455
    %v1488 = vsub.f32 0.0, %v1456
    %v1489 = vmul.f32 %v1457, 1.442695
    %v1490 = vpow.pop %v1489
    %v1491 = vmul.f32 %v1458, 1.442695
    %v1492 = vpow.pop %v1491
    %v1493 = vmul.f32 %v1459, 1.442695
    %v1494 = vpow.pop %v1493
    %v1495 = vmul.f32 %v1460, 1.442695
    %v1496 = vpow.pop %v1495
    %v1497 = vmul.f32 %v1461, 1.442695
    %v1498 = vpow.pop %v1497
    %v1499 = vmul.f32 %v1462, 1.442695
    %v1500 = vpow.pop %v1499
    %v1501 = vmul.f32 %v1463, 1.442695
    %v1502 = vpow.pop %v1501
    %v1503 = vmul.f32 %v1464, 1.442695
    %v1504 = vpow.pop %v1503
    %v1505 = vmul.f32 %v1465, 1.442695
    %v1506 = vpow.pop %v1505
    %v1507 = vmul.f32 %v1466, 1.442695
    %v1508 = vpow.pop %v1507
    %v1509 = vmul.f32 %v1467, 1.442695
    %v1510 = vpow.pop %v1509
    %v1511 = vmul.f32 %v1468, 1.442695
    %v1512 = vpow.pop %v1511
    %v1513 = vmul.f32 %v1469, 1.442695
    %v1514 = vpow.pop %v1513
    %v1515 = vmul.f32 %v1470, 1.442695
    %v1516 = vpow.pop %v1515
    %v1517 = vmul.f32 %v1471, 1.442695
    %v1518 = vpow.pop %v1517
    %v1519 = vmul.f32 %v1472, 1.442695
    %v1520 = vpow.pop %v1519
    %v1521 = vmul.f32 %v1473, 1.442695
    %v1522 = vpow.pop %v1521
    %v1523 = vmul.f32 %v1474, 1.442695
    %v1524 = vpow.pop %v1523
    %v1525 = vmul.f32 %v1475, 1.442695
    %v1526 = vpow.pop %v1525
    %v1527 = vmul.f32 %v1476, 1.442695
    %v1528 = vpow.pop %v1527
    %v1529 = vmul.f32 %v1477, 1.442695
    %v1530 = vpow.pop %v1529
    %v1531 = vmul.f32 %v1478, 1.442695
    %v1532 = vpow.pop %v1531
    %v1533 = vmul.f32 %v1479, 1.442695
    %v1534 = vpow.pop %v1533
    %v1535 = vmul.f32 %v1480, 1.442695
    %v1536 = vpow.pop %v1535
    %v1537 = vmul.f32 %v1481, 1.442695
    %v1538 = vpow.pop %v1537
    %v1539 = vmul.f32 %v1482, 1.442695
    %v1540 = vpow.pop %v1539
    %v1541 = vmul.f32 %v1483, 1.442695
    %v1542 = vpow.pop %v1541
    %v1543 = vmul.f32 %v1484, 1.442695
    %v1544 = vpow.pop %v1543
    %v1545 = vmul.f32 %v1485, 1.442695
    %v1546 = vpow.pop %v1545
    %v1547 = vmul.f32 %v1486, 1.442695
    %v1548 = vpow.pop %v1547
    %v1549 = vmul.f32 %v1487, 1.442695
    %v1550 = vpow.pop %v1549
    %v1551 = vmul.f32 %v1488, 1.442695
    %v1552 = vpow.pop %v1551
    %v1553 = vadd.f32 %v1490, 1.0
    %v1554 = vlog2.pop %v1553
    %v1555 = vmul.f32 %v1554, 0.6931472
    %v1556 = vmul.f32 -0.5, %v1490
    %v1557 = vadd.f32 %v1556, 1.0
    %v1558 = vmul.f32 %v1557, %v1490
    %v1559 = vand.u32 2147483647, %v1490
    %vm1560 = vcmp.lt.f32.partialorder %v1559, 0.0004427343
    %v1561 = vsel %vm1560, %v1558, %v1555
    %v1562 = vadd.f32 %v1492, 1.0
    %v1563 = vlog2.pop %v1562
    %v1564 = vmul.f32 %v1563, 0.6931472
    %v1565 = vmul.f32 -0.5, %v1492
    %v1566 = vadd.f32 %v1565, 1.0
    %v1567 = vmul.f32 %v1566, %v1492
    %v1568 = vand.u32 2147483647, %v1492
    %vm1569 = vcmp.lt.f32.partialorder %v1568, 0.0004427343
    %v1570 = vsel %vm1569, %v1567, %v1564
    %v1571 = vadd.f32 %v1494, 1.0
    %v1572 = vlog2.pop %v1571
    %v1573 = vmul.f32 %v1572, 0.6931472
    %v1574 = vmul.f32 -0.5, %v1494
    %v1575 = vadd.f32 %v1574, 1.0
    %v1576 = vmul.f32 %v1575, %v1494
    %v1577 = vand.u32 2147483647, %v1494
    %vm1578 = vcmp.lt.f32.partialorder %v1577, 0.0004427343
    %v1579 = vsel %vm1578, %v1576, %v1573
    %v1580 = vadd.f32 %v1496, 1.0
    %v1581 = vlog2.pop %v1580
    %v1582 = vmul.f32 %v1581, 0.6931472
    %v1583 = vmul.f32 -0.5, %v1496
    %v1584 = vadd.f32 %v1583, 1.0
    %v1585 = vmul.f32 %v1584, %v1496
    %v1586 = vand.u32 2147483647, %v1496
    %vm1587 = vcmp.lt.f32.partialorder %v1586, 0.0004427343
    %v1588 = vsel %vm1587, %v1585, %v1582
    %v1589 = vadd.f32 %v1498, 1.0
    %v1590 = vlog2.pop %v1589
    %v1591 = vmul.f32 %v1590, 0.6931472
    %v1592 = vmul.f32 -0.5, %v1498
    %v1593 = vadd.f32 %v1592, 1.0
    %v1594 = vmul.f32 %v1593, %v1498
    %v1595 = vand.u32 2147483647, %v1498
    %vm1596 = vcmp.lt.f32.partialorder %v1595, 0.0004427343
    %v1597 = vsel %vm1596, %v1594, %v1591
    %v1598 = vadd.f32 %v1500, 1.0
    %v1599 = vlog2.pop %v1598
    %v1600 = vmul.f32 %v1599, 0.6931472
    %v1601 = vmul.f32 -0.5, %v1500
    %v1602 = vadd.f32 %v1601, 1.0
    %v1603 = vmul.f32 %v1602, %v1500
    %v1604 = vand.u32 2147483647, %v1500
    %vm1605 = vcmp.lt.f32.partialorder %v1604, 0.0004427343
    %v1606 = vsel %vm1605, %v1603, %v1600
    %v1607 = vadd.f32 %v1502, 1.0
    %v1608 = vlog2.pop %v1607
    %v1609 = vmul.f32 %v1608, 0.6931472
    %v1610 = vmul.f32 -0.5, %v1502
    %v1611 = vadd.f32 %v1610, 1.0
    %v1612 = vmul.f32 %v1611, %v1502
    %v1613 = vand.u32 2147483647, %v1502
    %vm1614 = vcmp.lt.f32.partialorder %v1613, 0.0004427343
    %v1615 = vsel %vm1614, %v1612, %v1609
    %v1616 = vadd.f32 %v1504, 1.0
    %v1617 = vlog2.pop %v1616
    %v1618 = vmul.f32 %v1617, 0.6931472
    %v1619 = vmul.f32 -0.5, %v1504
    %v1620 = vadd.f32 %v1619, 1.0
    %v1621 = vmul.f32 %v1620, %v1504
    %v1622 = vand.u32 2147483647, %v1504
    %vm1623 = vcmp.lt.f32.partialorder %v1622, 0.0004427343
    %v1624 = vsel %vm1623, %v1621, %v1618
    %v1625 = vadd.f32 %v1506, 1.0
    %v1626 = vlog2.pop %v1625
    %v1627 = vmul.f32 %v1626, 0.6931472
    %v1628 = vmul.f32 -0.5, %v1506
    %v1629 = vadd.f32 %v1628, 1.0
    %v1630 = vmul.f32 %v1629, %v1506
    %v1631 = vand.u32 2147483647, %v1506
    %vm1632 = vcmp.lt.f32.partialorder %v1631, 0.0004427343
    %v1633 = vsel %vm1632, %v1630, %v1627
    %v1634 = vadd.f32 %v1508, 1.0
    %v1635 = vlog2.pop %v1634
    %v1636 = vmul.f32 %v1635, 0.6931472
    %v1637 = vmul.f32 -0.5, %v1508
    %v1638 = vadd.f32 %v1637, 1.0
    %v1639 = vmul.f32 %v1638, %v1508
    %v1640 = vand.u32 2147483647, %v1508
    %vm1641 = vcmp.lt.f32.partialorder %v1640, 0.0004427343
    %v1642 = vsel %vm1641, %v1639, %v1636
    %v1643 = vadd.f32 %v1510, 1.0
    %v1644 = vlog2.pop %v1643
    %v1645 = vmul.f32 %v1644, 0.6931472
    %v1646 = vmul.f32 -0.5, %v1510
    %v1647 = vadd.f32 %v1646, 1.0
    %v1648 = vmul.f32 %v1647, %v1510
    %v1649 = vand.u32 2147483647, %v1510
    %vm1650 = vcmp.lt.f32.partialorder %v1649, 0.0004427343
    %v1651 = vsel %vm1650, %v1648, %v1645
    %v1652 = vadd.f32 %v1512, 1.0
    %v1653 = vlog2.pop %v1652
    %v1654 = vmul.f32 %v1653, 0.6931472
    %v1655 = vmul.f32 -0.5, %v1512
    %v1656 = vadd.f32 %v1655, 1.0
    %v1657 = vmul.f32 %v1656, %v1512
    %v1658 = vand.u32 2147483647, %v1512
    %vm1659 = vcmp.lt.f32.partialorder %v1658, 0.0004427343
    %v1660 = vsel %vm1659, %v1657, %v1654
    %v1661 = vadd.f32 %v1514, 1.0
    %v1662 = vlog2.pop %v1661
    %v1663 = vmul.f32 %v1662, 0.6931472
    %v1664 = vmul.f32 -0.5, %v1514
    %v1665 = vadd.f32 %v1664, 1.0
    %v1666 = vmul.f32 %v1665, %v1514
    %v1667 = vand.u32 2147483647, %v1514
    %vm1668 = vcmp.lt.f32.partialorder %v1667, 0.0004427343
    %v1669 = vsel %vm1668, %v1666, %v1663
    %v1670 = vadd.f32 %v1516, 1.0
    %v1671 = vlog2.pop %v1670
    %v1672 = vmul.f32 %v1671, 0.6931472
    %v1673 = vmul.f32 -0.5, %v1516
    %v1674 = vadd.f32 %v1673, 1.0
    %v1675 = vmul.f32 %v1674, %v1516
    %v1676 = vand.u32 2147483647, %v1516
    %vm1677 = vcmp.lt.f32.partialorder %v1676, 0.0004427343
    %v1678 = vsel %vm1677, %v1675, %v1672
    %v1679 = vadd.f32 %v1518, 1.0
    %v1680 = vlog2.pop %v1679
    %v1681 = vmul.f32 %v1680, 0.6931472
    %v1682 = vmul.f32 -0.5, %v1518
    %v1683 = vadd.f32 %v1682, 1.0
    %v1684 = vmul.f32 %v1683, %v1518
    %v1685 = vand.u32 2147483647, %v1518
    %vm1686 = vcmp.lt.f32.partialorder %v1685, 0.0004427343
    %v1687 = vsel %vm1686, %v1684, %v1681
    %v1688 = vadd.f32 %v1520, 1.0
    %v1689 = vlog2.pop %v1688
    %v1690 = vmul.f32 %v1689, 0.6931472
    %v1691 = vmul.f32 -0.5, %v1520
    %v1692 = vadd.f32 %v1691, 1.0
    %v1693 = vmul.f32 %v1692, %v1520
    %v1694 = vand.u32 2147483647, %v1520
    %vm1695 = vcmp.lt.f32.partialorder %v1694, 0.0004427343
    %v1696 = vsel %vm1695, %v1693, %v1690
    %v1697 = vadd.f32 %v1522, 1.0
    %v1698 = vlog2.pop %v1697
    %v1699 = vmul.f32 %v1698, 0.6931472
    %v1700 = vmul.f32 -0.5, %v1522
    %v1701 = vadd.f32 %v1700, 1.0
    %v1702 = vmul.f32 %v1701, %v1522
    %v1703 = vand.u32 2147483647, %v1522
    %vm1704 = vcmp.lt.f32.partialorder %v1703, 0.0004427343
    %v1705 = vsel %vm1704, %v1702, %v1699
    %v1706 = vadd.f32 %v1524, 1.0
    %v1707 = vlog2.pop %v1706
    %v1708 = vmul.f32 %v1707, 0.6931472
    %v1709 = vmul.f32 -0.5, %v1524
    %v1710 = vadd.f32 %v1709, 1.0
    %v1711 = vmul.f32 %v1710, %v1524
    %v1712 = vand.u32 2147483647, %v1524
    %vm1713 = vcmp.lt.f32.partialorder %v1712, 0.0004427343
    %v1714 = vsel %vm1713, %v1711, %v1708
    %v1715 = vadd.f32 %v1526, 1.0
    %v1716 = vlog2.pop %v1715
    %v1717 = vmul.f32 %v1716, 0.6931472
    %v1718 = vmul.f32 -0.5, %v1526
    %v1719 = vadd.f32 %v1718, 1.0
    %v1720 = vmul.f32 %v1719, %v1526
    %v1721 = vand.u32 2147483647, %v1526
    %vm1722 = vcmp.lt.f32.partialorder %v1721, 0.0004427343
    %v1723 = vsel %vm1722, %v1720, %v1717
    %v1724 = vadd.f32 %v1528, 1.0
    %v1725 = vlog2.pop %v1724
    %v1726 = vmul.f32 %v1725, 0.6931472
    %v1727 = vmul.f32 -0.5, %v1528
    %v1728 = vadd.f32 %v1727, 1.0
    %v1729 = vmul.f32 %v1728, %v1528
    %v1730 = vand.u32 2147483647, %v1528
    %vm1731 = vcmp.lt.f32.partialorder %v1730, 0.0004427343
    %v1732 = vsel %vm1731, %v1729, %v1726
    %v1733 = vadd.f32 %v1530, 1.0
    %v1734 = vlog2.pop %v1733
    %v1735 = vmul.f32 %v1734, 0.6931472
    %v1736 = vmul.f32 -0.5, %v1530
    %v1737 = vadd.f32 %v1736, 1.0
    %v1738 = vmul.f32 %v1737, %v1530
    %v1739 = vand.u32 2147483647, %v1530
    %vm1740 = vcmp.lt.f32.partialorder %v1739, 0.0004427343
    %v1741 = vsel %vm1740, %v1738, %v1735
    %v1742 = vadd.f32 %v1532, 1.0
    %v1743 = vlog2.pop %v1742
    %v1744 = vmul.f32 %v1743, 0.6931472
    %v1745 = vmul.f32 -0.5, %v1532
    %v1746 = vadd.f32 %v1745, 1.0
    %v1747 = vmul.f32 %v1746, %v1532
    %v1748 = vand.u32 2147483647, %v1532
    %vm1749 = vcmp.lt.f32.partialorder %v1748, 0.0004427343
    %v1750 = vsel %vm1749, %v1747, %v1744
    %v1751 = vadd.f32 %v1534, 1.0
    %v1752 = vlog2.pop %v1751
    %v1753 = vmul.f32 %v1752, 0.6931472
    %v1754 = vmul.f32 -0.5, %v1534
    %v1755 = vadd.f32 %v1754, 1.0
    %v1756 = vmul.f32 %v1755, %v1534
    %v1757 = vand.u32 2147483647, %v1534
    %vm1758 = vcmp.lt.f32.partialorder %v1757, 0.0004427343
    %v1759 = vsel %vm1758, %v1756, %v1753
    %v1760 = vadd.f32 %v1536, 1.0
    %v1761 = vlog2.pop %v1760
    %v1762 = vmul.f32 %v1761, 0.6931472
    %v1763 = vmul.f32 -0.5, %v1536
    %v1764 = vadd.f32 %v1763, 1.0
    %v1765 = vmul.f32 %v1764, %v1536
    %v1766 = vand.u32 2147483647, %v1536
    %vm1767 = vcmp.lt.f32.partialorder %v1766, 0.0004427343
    %v1768 = vsel %vm1767, %v1765, %v1762
    %v1769 = vadd.f32 %v1538, 1.0
    %v1770 = vlog2.pop %v1769
    %v1771 = vmul.f32 %v1770, 0.6931472
    %v1772 = vmul.f32 -0.5, %v1538
    %v1773 = vadd.f32 %v1772, 1.0
    %v1774 = vmul.f32 %v1773, %v1538
    %v1775 = vand.u32 2147483647, %v1538
    %vm1776 = vcmp.lt.f32.partialorder %v1775, 0.0004427343
    %v1777 = vsel %vm1776, %v1774, %v1771
    %v1778 = vadd.f32 %v1540, 1.0
    %v1779 = vlog2.pop %v1778
    %v1780 = vmul.f32 %v1779, 0.6931472
    %v1781 = vmul.f32 -0.5, %v1540
    %v1782 = vadd.f32 %v1781, 1.0
    %v1783 = vmul.f32 %v1782, %v1540
    %v1784 = vand.u32 2147483647, %v1540
    %vm1785 = vcmp.lt.f32.partialorder %v1784, 0.0004427343
    %v1786 = vsel %vm1785, %v1783, %v1780
    %v1787 = vadd.f32 %v1542, 1.0
    %v1788 = vlog2.pop %v1787
    %v1789 = vmul.f32 %v1788, 0.6931472
    %v1790 = vmul.f32 -0.5, %v1542
    %v1791 = vadd.f32 %v1790, 1.0
    %v1792 = vmul.f32 %v1791, %v1542
    %v1793 = vand.u32 2147483647, %v1542
    %vm1794 = vcmp.lt.f32.partialorder %v1793, 0.0004427343
    %v1795 = vsel %vm1794, %v1792, %v1789
    %v1796 = vadd.f32 %v1544, 1.0
    %v1797 = vlog2.pop %v1796
    %v1798 = vmul.f32 %v1797, 0.6931472
    %v1799 = vmul.f32 -0.5, %v1544
    %v1800 = vadd.f32 %v1799, 1.0
    %v1801 = vmul.f32 %v1800, %v1544
    %v1802 = vand.u32 2147483647, %v1544
    %vm1803 = vcmp.lt.f32.partialorder %v1802, 0.0004427343
    %v1804 = vsel %vm1803, %v1801, %v1798
    %v1805 = vadd.f32 %v1546, 1.0
    %v1806 = vlog2.pop %v1805
    %v1807 = vmul.f32 %v1806, 0.6931472
    %v1808 = vmul.f32 -0.5, %v1546
    %v1809 = vadd.f32 %v1808, 1.0
    %v1810 = vmul.f32 %v1809, %v1546
    %v1811 = vand.u32 2147483647, %v1546
    %vm1812 = vcmp.lt.f32.partialorder %v1811, 0.0004427343
    %v1813 = vsel %vm1812, %v1810, %v1807
    %v1814 = vadd.f32 %v1548, 1.0
    %v1815 = vlog2.pop %v1814
    %v1816 = vmul.f32 %v1815, 0.6931472
    %v1817 = vmul.f32 -0.5, %v1548
    %v1818 = vadd.f32 %v1817, 1.0
    %v1819 = vmul.f32 %v1818, %v1548
    %v1820 = vand.u32 2147483647, %v1548
    %vm1821 = vcmp.lt.f32.partialorder %v1820, 0.0004427343
    %v1822 = vsel %vm1821, %v1819, %v1816
    %v1823 = vadd.f32 %v1550, 1.0
    %v1824 = vlog2.pop %v1823
    %v1825 = vmul.f32 %v1824, 0.6931472
    %v1826 = vmul.f32 -0.5, %v1550
    %v1827 = vadd.f32 %v1826, 1.0
    %v1828 = vmul.f32 %v1827, %v1550
    %v1829 = vand.u32 2147483647, %v1550
    %vm1830 = vcmp.lt.f32.partialorder %v1829, 0.0004427343
    %v1831 = vsel %vm1830, %v1828, %v1825
    %v1832 = vadd.f32 %v1552, 1.0
    %v1833 = vlog2.pop %v1832
    %v1834 = vmul.f32 %v1833, 0.6931472
    %v1835 = vmul.f32 -0.5, %v1552
    %v1836 = vadd.f32 %v1835, 1.0
    %v1837 = vmul.f32 %v1836, %v1552
    %v1838 = vand.u32 2147483647, %v1552
    %vm1839 = vcmp.lt.f32.partialorder %v1838, 0.0004427343
    %v1840 = vsel %vm1839, %v1837, %v1834
    %v1841 = vadd.f32 %v1393, %v1561
    %v1842 = vadd.f32 %v1394, %v1570
    %v1843 = vadd.f32 %v1395, %v1579
    %v1844 = vadd.f32 %v1396, %v1588
    %v1845 = vadd.f32 %v1397, %v1597
    %v1846 = vadd.f32 %v1398, %v1606
    %v1847 = vadd.f32 %v1399, %v1615
    %v1848 = vadd.f32 %v1400, %v1624
    %v1849 = vadd.f32 %v1401, %v1633
    %v1850 = vadd.f32 %v1402, %v1642
    %v1851 = vadd.f32 %v1403, %v1651
    %v1852 = vadd.f32 %v1404, %v1660
    %v1853 = vadd.f32 %v1405, %v1669
    %v1854 = vadd.f32 %v1406, %v1678
    %v1855 = vadd.f32 %v1407, %v1687
    %v1856 = vadd.f32 %v1408, %v1696
    %v1857 = vadd.f32 %v1409, %v1705
    %v1858 = vadd.f32 %v1410, %v1714
    %v1859 = vadd.f32 %v1411, %v1723
    %v1860 = vadd.f32 %v1412, %v1732
    %v1861 = vadd.f32 %v1413, %v1741
    %v1862 = vadd.f32 %v1414, %v1750
    %v1863 = vadd.f32 %v1415, %v1759
    %v1864 = vadd.f32 %v1416, %v1768
    %v1865 = vadd.f32 %v1417, %v1777
    %v1866 = vadd.f32 %v1418, %v1786
    %v1867 = vadd.f32 %v1419, %v1795
    %v1868 = vadd.f32 %v1420, %v1804
    %v1869 = vadd.f32 %v1421, %v1813
    %v1870 = vadd.f32 %v1422, %v1822
    %v1871 = vadd.f32 %v1423, %v1831
    %v1872 = vadd.f32 %v1424, %v1840
    %v1873 = vsel %vm1233, %v1841, 0.0
    %v1874 = vsel %vm1234, %v1842, 0.0
    %v1875 = vsel %vm1235, %v1843, 0.0
    %v1876 = vsel %vm1236, %v1844, 0.0
    %v1877 = vsel %vm1237, %v1845, 0.0
    %v1878 = vsel %vm1238, %v1846, 0.0
    %v1879 = vsel %vm1239, %v1847, 0.0
    %v1880 = vsel %vm1240, %v1848, 0.0
    %v1881 = vsel %vm1241, %v1849, 0.0
    %v1882 = vsel %vm1242, %v1850, 0.0
    %v1883 = vsel %vm1243, %v1851, 0.0
    %v1884 = vsel %vm1244, %v1852, 0.0
    %v1885 = vsel %vm1245, %v1853, 0.0
    %v1886 = vsel %vm1246, %v1854, 0.0
    %v1887 = vsel %vm1247, %v1855, 0.0
    %v1888 = vsel %vm1248, %v1856, 0.0
    %v1889 = vsel %vm1249, %v1857, 0.0
    %v1890 = vsel %vm1250, %v1858, 0.0
    %v1891 = vsel %vm1251, %v1859, 0.0
    %v1892 = vsel %vm1252, %v1860, 0.0
    %v1893 = vsel %vm1253, %v1861, 0.0
    %v1894 = vsel %vm1254, %v1862, 0.0
    %v1895 = vsel %vm1255, %v1863, 0.0
    %v1896 = vsel %vm1256, %v1864, 0.0
    %v1897 = vsel %vm1257, %v1865, 0.0
    %v1898 = vsel %vm1258, %v1866, 0.0
    %v1899 = vsel %vm1259, %v1867, 0.0
    %v1900 = vsel %vm1260, %v1868, 0.0
    %v1901 = vsel %vm1261, %v1869, 0.0
    %v1902 = vsel %vm1262, %v1870, 0.0
    %v1903 = vsel %vm1263, %v1871, 0.0
    %v1904 = vsel %vm1264, %v1872, 0.0
    %v1905 = vld [vmem:[%s2] sm:$0xff]
    %v1906 = vld [vmem:[%s2 + $0x8] sm:$0xff]
    %v1907 = vld [vmem:[%s2 + $0x10] sm:$0xff]
    %v1908 = vld [vmem:[%s2 + $0x18] sm:$0xff]
    %1941 = vst [vmem:[#allocation1] ss:$9 sm:$0xff] %v1873
    %s1942 = scalar_lea.vmem [#allocation1], 1
    %1943 = vst [vmem:[%s1942] ss:$9 sm:$0xff] %v1874
    %s1944 = scalar_lea.vmem [#allocation1], 2
    %1945 = vst [vmem:[%s1944] ss:$9 sm:$0xff] %v1875
    %s1946 = scalar_lea.vmem [#allocation1], 3
    %1947 = vst [vmem:[%s1946] ss:$9 sm:$0xff] %v1876
    %s1948 = scalar_lea.vmem [#allocation1], 4
    %1949 = vst [vmem:[%s1948] ss:$9 sm:$0xff] %v1877
    %s1950 = scalar_lea.vmem [#allocation1], 5
    %1951 = vst [vmem:[%s1950] ss:$9 sm:$0xff] %v1878
    %s1952 = scalar_lea.vmem [#allocation1], 6
    %1953 = vst [vmem:[%s1952] ss:$9 sm:$0xff] %v1879
    %s1954 = scalar_lea.vmem [#allocation1], 7
    %1955 = vst [vmem:[%s1954] ss:$9 sm:$0xff] %v1880
    %v1956 = vld [vmem:[#allocation1] sm:$0xff]
    %v1957 = vld [vmem:[#allocation1 + $0x9] sm:$0xff]
    %v1958 = vld [vmem:[#allocation1 + $0x12] sm:$0xff]
    %v1959 = vld [vmem:[#allocation1 + $0x1b] sm:$0xff]
    %1960 = vst [vmem:[#allocation1] ss:$9 sm:$0xff] %v1881
    %1961 = vst [vmem:[%s1942] ss:$9 sm:$0xff] %v1882
    %1962 = vst [vmem:[%s1944] ss:$9 sm:$0xff] %v1883
    %1963 = vst [vmem:[%s1946] ss:$9 sm:$0xff] %v1884
    %1964 = vst [vmem:[%s1948] ss:$9 sm:$0xff] %v1885
    %1965 = vst [vmem:[%s1950] ss:$9 sm:$0xff] %v1886
    %1966 = vst [vmem:[%s1952] ss:$9 sm:$0xff] %v1887
    %1967 = vst [vmem:[%s1954] ss:$9 sm:$0xff] %v1888
    %v1968 = vld [vmem:[#allocation1] sm:$0xff]
    %v1969 = vld [vmem:[#allocation1 + $0x9] sm:$0xff]
    %v1970 = vld [vmem:[#allocation1 + $0x12] sm:$0xff]
    %v1971 = vld [vmem:[#allocation1 + $0x1b] sm:$0xff]
    %1972 = vst [vmem:[#allocation1] ss:$9 sm:$0xff] %v1889
    %1973 = vst [vmem:[%s1942] ss:$9 sm:$0xff] %v1890
    %1974 = vst [vmem:[%s1944] ss:$9 sm:$0xff] %v1891
    %1975 = vst [vmem:[%s1946] ss:$9 sm:$0xff] %v1892
    %1976 = vst [vmem:[%s1948] ss:$9 sm:$0xff] %v1893
    %1977 = vst [vmem:[%s1950] ss:$9 sm:$0xff] %v1894
    %1978 = vst [vmem:[%s1952] ss:$9 sm:$0xff] %v1895
    %1979 = vst [vmem:[%s1954] ss:$9 sm:$0xff] %v1896
    %v1980 = vld [vmem:[#allocation1] sm:$0xff]
    %v1981 = vld [vmem:[#allocation1 + $0x9] sm:$0xff]
    %v1982 = vld [vmem:[#allocation1 + $0x12] sm:$0xff]
    %v1983 = vld [vmem:[#allocation1 + $0x1b] sm:$0xff]
    %1984 = vst [vmem:[#allocation1] ss:$9 sm:$0xff] %v1897
    %1985 = vst [vmem:[%s1942] ss:$9 sm:$0xff] %v1898
    %1986 = vst [vmem:[%s1944] ss:$9 sm:$0xff] %v1899
    %1987 = vst [vmem:[%s1946] ss:$9 sm:$0xff] %v1900
    %1988 = vst [vmem:[%s1948] ss:$9 sm:$0xff] %v1901
    %1989 = vst [vmem:[%s1950] ss:$9 sm:$0xff] %v1902
    %1990 = vst [vmem:[%s1952] ss:$9 sm:$0xff] %v1903
    %1991 = vst [vmem:[%s1954] ss:$9 sm:$0xff] %v1904
    %v1992 = vld [vmem:[#allocation1] sm:$0xff]
    %v1993 = vld [vmem:[#allocation1 + $0x9] sm:$0xff]
    %v1994 = vld [vmem:[#allocation1 + $0x12] sm:$0xff]
    %v1995 = vld [vmem:[#allocation1 + $0x1b] sm:$0xff]
    %v2012 = vadd.f32 %v1956, %v1968
    %v2013 = vadd.f32 %v2012, %v1980
    %v2014 = vadd.f32 %v2013, %v1992
    %v2015 = vadd.f32 %v1957, %v1969
    %v2016 = vadd.f32 %v2015, %v1981
    %v2017 = vadd.f32 %v2016, %v1993
    %v2018 = vadd.f32 %v1958, %v1970
    %v2019 = vadd.f32 %v2018, %v1982
    %v2020 = vadd.f32 %v2019, %v1994
    %v2021 = vadd.f32 %v1959, %v1971
    %v2022 = vadd.f32 %v2021, %v1983
    %v2023 = vadd.f32 %v2022, %v1995
    %v2024 = vadd.f32 %v1905, %v2014
    %v2025 = vadd.f32 %v1906, %v2017
    %v2026 = vadd.f32 %v1907, %v2020
    %v2027 = vadd.f32 %v1908, %v2023
    %2028 = vst [vmem:[%s2] sm:$0xff] %v2024
    %2029 = vst [vmem:[%s2 + $0x8] sm:$0xff] %v2025
    %2030 = vst [vmem:[%s2 + $0x10] sm:$0xff] %v2026
    %2031 = vst [vmem:[%s2 + $0x18] sm:$0xff] %v2027
    %v2032 = vld [vmem:[%s3] sm:$0xff]
    %v2033 = vld [vmem:[%s3 + $0x8] sm:$0xff]
    %v2034 = vld [vmem:[%s3 + $0x10] sm:$0xff]
    %v2035 = vld [vmem:[%s3 + $0x18] sm:$0xff]
    %2068 = vst [vmem:[#allocation1] ss:$9 sm:$0xff] %v1297
    %s2069 = scalar_lea.vmem [#allocation1], 1
    %2070 = vst [vmem:[%s2069] ss:$9 sm:$0xff] %v1298
    %s2071 = scalar_lea.vmem [#allocation1], 2
    %2072 = vst [vmem:[%s2071] ss:$9 sm:$0xff] %v1299
    %s2073 = scalar_lea.vmem [#allocation1], 3
    %2074 = vst [vmem:[%s2073] ss:$9 sm:$0xff] %v1300
    %s2075 = scalar_lea.vmem [#allocation1], 4
    %2076 = vst [vmem:[%s2075] ss:$9 sm:$0xff] %v1301
    %s2077 = scalar_lea.vmem [#allocation1], 5
    %2078 = vst [vmem:[%s2077] ss:$9 sm:$0xff] %v1302
    %s2079 = scalar_lea.vmem [#allocation1], 6
    %2080 = vst [vmem:[%s2079] ss:$9 sm:$0xff] %v1303
    %s2081 = scalar_lea.vmem [#allocation1], 7
    %2082 = vst [vmem:[%s2081] ss:$9 sm:$0xff] %v1304
    %v2083 = vld [vmem:[#allocation1] sm:$0xff]
    %v2084 = vld [vmem:[#allocation1 + $0x9] sm:$0xff]
    %v2085 = vld [vmem:[#allocation1 + $0x12] sm:$0xff]
    %v2086 = vld [vmem:[#allocation1 + $0x1b] sm:$0xff]
    %2087 = vst [vmem:[#allocation1] ss:$9 sm:$0xff] %v1305
    %2088 = vst [vmem:[%s2069] ss:$9 sm:$0xff] %v1306
    %2089 = vst [vmem:[%s2071] ss:$9 sm:$0xff] %v1307
    %2090 = vst [vmem:[%s2073] ss:$9 sm:$0xff] %v1308
    %2091 = vst [vmem:[%s2075] ss:$9 sm:$0xff] %v1309
    %2092 = vst [vmem:[%s2077] ss:$9 sm:$0xff] %v1310
    %2093 = vst [vmem:[%s2079] ss:$9 sm:$0xff] %v1311
    %2094 = vst [vmem:[%s2081] ss:$9 sm:$0xff] %v1312
    %v2095 = vld [vmem:[#allocation1] sm:$0xff]
    %v2096 = vld [vmem:[#allocation1 + $0x9] sm:$0xff]
    %v2097 = vld [vmem:[#allocation1 + $0x12] sm:$0xff]
    %v2098 = vld [vmem:[#allocation1 + $0x1b] sm:$0xff]
    %2099 = vst [vmem:[#allocation1] ss:$9 sm:$0xff] %v1313
    %2100 = vst [vmem:[%s2069] ss:$9 sm:$0xff] %v1314
    %2101 = vst [vmem:[%s2071] ss:$9 sm:$0xff] %v1315
    %2102 = vst [vmem:[%s2073] ss:$9 sm:$0xff] %v1316
    %2103 = vst [vmem:[%s2075] ss:$9 sm:$0xff] %v1317
    %2104 = vst [vmem:[%s2077] ss:$9 sm:$0xff] %v1318
    %2105 = vst [vmem:[%s2079] ss:$9 sm:$0xff] %v1319
    %2106 = vst [vmem:[%s2081] ss:$9 sm:$0xff] %v1320
    %v2107 = vld [vmem:[#allocation1] sm:$0xff]
    %v2108 = vld [vmem:[#allocation1 + $0x9] sm:$0xff]
    %v2109 = vld [vmem:[#allocation1 + $0x12] sm:$0xff]
    %v2110 = vld [vmem:[#allocation1 + $0x1b] sm:$0xff]
    %2111 = vst [vmem:[#allocation1] ss:$9 sm:$0xff] %v1321
    %2112 = vst [vmem:[%s2069] ss:$9 sm:$0xff] %v1322
    %2113 = vst [vmem:[%s2071] ss:$9 sm:$0xff] %v1323
    %2114 = vst [vmem:[%s2073] ss:$9 sm:$0xff] %v1324
    %2115 = vst [vmem:[%s2075] ss:$9 sm:$0xff] %v1325
    %2116 = vst [vmem:[%s2077] ss:$9 sm:$0xff] %v1326
    %2117 = vst [vmem:[%s2079] ss:$9 sm:$0xff] %v1327
    %2118 = vst [vmem:[%s2081] ss:$9 sm:$0xff] %v1328
    %v2119 = vld [vmem:[#allocation1] sm:$0xff]
    %v2120 = vld [vmem:[#allocation1 + $0x9] sm:$0xff]
    %v2121 = vld [vmem:[#allocation1 + $0x12] sm:$0xff]
    %v2122 = vld [vmem:[#allocation1 + $0x1b] sm:$0xff]
    %v2139 = vadd.f32 %v2083, %v2095
    %v2140 = vadd.f32 %v2139, %v2107
    %v2141 = vadd.f32 %v2140, %v2119
    %v2142 = vadd.f32 %v2084, %v2096
    %v2143 = vadd.f32 %v2142, %v2108
    %v2144 = vadd.f32 %v2143, %v2120
    %v2145 = vadd.f32 %v2085, %v2097
    %v2146 = vadd.f32 %v2145, %v2109
    %v2147 = vadd.f32 %v2146, %v2121
    %v2148 = vadd.f32 %v2086, %v2098
    %v2149 = vadd.f32 %v2148, %v2110
    %v2150 = vadd.f32 %v2149, %v2122
    %v2151 = vadd.f32 %v2032, %v2141
    %v2152 = vadd.f32 %v2033, %v2144
    %v2153 = vadd.f32 %v2034, %v2147
    %v2154 = vadd.f32 %v2035, %v2150
    %2155 = vst [vmem:[%s3] sm:$0xff] %v2151
    %2156 = vst [vmem:[%s3 + $0x8] sm:$0xff] %v2152
    %2157 = vst [vmem:[%s3 + $0x10] sm:$0xff] %v2153
    %2158 = vst [vmem:[%s3 + $0x18] sm:$0xff] %v2154
  $region21: #{bce_with_logits_loss_2d.1} parent=0 // pred_fallthru
    _
  // Predicated region
  $region22: #{bce_with_logits_loss_2d.1} parent=0 // pred_check
    _
  $region23: #{bce_with_logits_loss_2d.1} parent=0 // pred_check_branch
    %2160 = sbr.rel (0) target = $region25
  $region24: #{bce_with_logits_loss_2d.1} parent=0 // pred_region
    _
  $region25: #{bce_with_logits_loss_2d.1} parent=0 // pred_fallthru
    _
  // Predicated region
  $region26: #{bce_with_logits_loss_2d.1} parent=0 // pred_check
    _
  $region27: #{bce_with_logits_loss_2d.1} parent=0 // pred_check_branch
    %2162 = sbr.rel (0) target = $region29
  $region28: #{bce_with_logits_loss_2d.1} parent=0 // pred_region
    _
  $region29: #{bce_with_logits_loss_2d.1} parent=0 // pred_fallthru
    _
  // Predicated region
  $region30: #{bce_with_logits_loss_2d.1} parent=0 // pred_check
    _
  $region31: #{bce_with_logits_loss_2d.1} parent=0 // pred_check_branch
    %2164 = sbr.rel (0) target = $region33
  $region32: #{bce_with_logits_loss_2d.1} parent=0 // pred_region
    _
  $region33: #{bce_with_logits_loss_2d.1} parent=0 // pred_fallthru
    _
  // Predicated region
  $region34: #{bce_with_logits_loss_2d.1} parent=0 // pred_check
    _
  $region35: #{bce_with_logits_loss_2d.1} parent=0 // pred_check_branch
    %2166 = sbr.rel (0) target = $region37
  $region36: #{bce_with_logits_loss_2d.1} parent=0 // pred_region
    _
  $region37: #{bce_with_logits_loss_2d.1} parent=0 // pred_fallthru
    _

</llo_original>
